<compile_context>
chip_gen: v7x
topology: tpu7x:2x2x1
jax: 0.10.0
libtpu: 0.0.40
codegen_flags: <defaults>
</compile_context>

<pallas_src>
import functools

import jax
import jax.numpy as jnp
from jax.experimental import pallas as pl
from jax.experimental.pallas import tpu as pltpu


# ------------------------------ helpers ---------------------------------------

def _round_up(x, m):
    return ((x + m - 1) // m) * m


def _lane_pad(n):
    return _round_up(max(n, 1), 128)


def _pick_time_chunk(S, cap=32):
    """Largest divisor of S that is <= cap (bounds the xg scratch footprint)."""
    if S <= cap:
        return S
    for tc in range(cap, 0, -1):
        if S % tc == 0:
            return tc
    return S


def _pick_batch_block(B):
    """Per-generation batch block: >=2 parallel blocks on v7x, big block elsewhere."""
    B_pad = _round_up(max(B, 8), 8)
    try:
        kind = jax.devices()[0].device_kind.lower()
    except Exception:  # pragma: no cover - defensive; fall back to 1-TC heuristic
        kind = ""
    if "v7" in kind and B_pad >= 16:
        # v7x: 2 TensorCores -> make sure the "parallel" batch grid has >= 2 blocks.
        bb = min(128, _round_up(pl.cdiv(B_pad, 2), 8))
    else:
        # v5e/v6e: single TensorCore -> one big block fills the MXU M dimension
        # and amortizes per-timestep overhead (capped to keep h/c/gates in vregs).
        bb = min(B_pad, 256)
    return _round_up(B_pad, bb), bb


# ------------------------------ Fused kernel ----------------------------------

def _make_robustlog_kernel(num_layers, hidden_size, t_chunk, num_chunks, unroll):
    H = hidden_size

    def kernel(*args):
        x_ref = args[0]                               # (S, Bb, I)   matmul dtype
        layer_args = args[1:1 + 3 * num_layers]       # per layer: w_ih, w_hh, b
        w_fc_ref = args[1 + 3 * num_layers]           # (H, K)       matmul dtype
        b_fc_ref = args[2 + 3 * num_layers]           # (1, K)       f32
        o_ref = args[3 + 3 * num_layers]              # (Bb, K)      f32
        seq_ref = args[4 + 3 * num_layers]            # VMEM (S, Bb, H)         matmul dtype
        xg_ref = args[5 + 3 * num_layers]             # VMEM (t_chunk, Bb, 4H)  f32

        Bb = x_ref.shape[1]

        def run_layer(layer_idx, in_ref, write_seq):
            # Weight loads hoisted out of both the chunk loop and the time loop.
            w_ih = layer_args[3 * layer_idx + 0][...]     # (in_dim, 4H)
            w_hh = layer_args[3 * layer_idx + 1][...]     # (H, 4H)  -- stationary
            b = layer_args[3 * layer_idx + 2][...]        # (1, 4H)  f32
            in_dim = in_ref.shape[2]
            cdt = w_hh.dtype

            h = jnp.zeros((Bb, H), jnp.float32)
            c = jnp.zeros((Bb, H), jnp.float32)

            for chunk in range(num_chunks):
                t0 = chunk * t_chunk

                # Hoisted input projection (+ bias) for this time chunk: one big
                # MXU matmul over t_chunk*Bb rows, off the serial recurrent path.
                x2d = in_ref[pl.ds(t0, t_chunk)].reshape(t_chunk * Bb, in_dim)
                xg = jnp.dot(x2d, w_ih, preferred_element_type=jnp.float32) + b
                xg_ref[...] = xg.reshape(t_chunk, Bb, 4 * H)

                def step(t, carry, _t0=t0):
                    h, c = carry
                    # Only the small h @ W_hh dot stays on the serial chain.
                    gates = xg_ref[t] + jnp.dot(
                        h.astype(cdt), w_hh, preferred_element_type=jnp.float32)
                    # Gate order packed as [i, f, o, g]: one sigmoid slab, one tanh.
                    sig = jax.nn.sigmoid(gates[:, :3 * H])
                    i_g = sig[:, 0 * H:1 * H]
                    f_g = sig[:, 1 * H:2 * H]
                    o_g = sig[:, 2 * H:3 * H]
                    g_g = jnp.tanh(gates[:, 3 * H:])
                    c_new = f_g * c + i_g * g_g
                    h_new = o_g * jnp.tanh(c_new)
                    if write_seq:
                        seq_ref[_t0 + t] = h_new.astype(seq_ref.dtype)
                    return h_new, c_new

                # Unrolled so the scheduler sees across timestep boundaries.
                h, c = jax.lax.fori_loop(0, t_chunk, step, (h, c), unroll=unroll)
            return h

        # Intermediate layers write their hidden sequence into seq_ref (VMEM only).
        in_ref = x_ref
        for l in range(num_layers - 1):
            run_layer(l, in_ref, write_seq=True)
            in_ref = seq_ref
        h_last = run_layer(num_layers - 1, in_ref, write_seq=False)

        # Final FC fused into the same kernel (only the last timestep is used).
        o_ref[...] = (jnp.dot(h_last.astype(w_fc_ref.dtype), w_fc_ref[...],
                              preferred_element_type=jnp.float32)
                      + b_fc_ref[...])

    return kernel


# ------------------------------- Forward wrapper -------------------------------

@functools.partial(jax.jit, static_argnames=("matmul_dtype",))
def robustlog_forward(features0, params, *, matmul_dtype=jnp.bfloat16):
    """features0: (B, S, I) batch_first, like PyTorch.  Returns (B, num_keys)."""
    B, S, I = features0.shape
    num_layers = len(params["layers"])
    H = params["layers"][0]["w_hh"].shape[0]
    K = params["w_fc"].shape[1]
    mdt = matmul_dtype

    B_pad, bb = _pick_batch_block(B)
    t_chunk = _pick_time_chunk(S)
    num_chunks = S // t_chunk
    if t_chunk <= 16:
        unroll = True
    elif t_chunk % 8 == 0:
        unroll = 8
    elif t_chunk % 4 == 0:
        unroll = 4
    else:
        unroll = True

    # Pad batch to a sublane tile and lay out seq-major for the kernel.
    x = features0.astype(mdt)
    x = jnp.pad(x, ((0, B_pad - B), (0, 0), (0, 0)))
    x = jnp.transpose(x, (1, 0, 2))                   # (S, B_pad, I)

    inputs = [x]
    in_specs = [pl.BlockSpec((S, bb, I), lambda j: (0, j, 0))]
    for lp in params["layers"]:
        in_dim = lp["w_ih"].shape[0]
        inputs += [lp["w_ih"].astype(mdt), lp["w_hh"].astype(mdt),
                   lp["b"].astype(jnp.float32)]
        in_specs += [
            pl.BlockSpec((in_dim, 4 * H), lambda j: (0, 0)),
            pl.BlockSpec((H, 4 * H), lambda j: (0, 0)),
            pl.BlockSpec((1, 4 * H), lambda j: (0, 0)),
        ]
    inputs += [params["w_fc"].astype(mdt), params["b_fc"].astype(jnp.float32)]
    in_specs += [
        pl.BlockSpec((H, K), lambda j: (0, 0)),
        pl.BlockSpec((1, K), lambda j: (0, 0)),
    ]

    # Scoped-VMEM budget: scratch + double-buffered input/weight/output blocks.
    msize = jnp.dtype(mdt).itemsize
    vmem_est = (
        2 * S * bb * _lane_pad(I) * msize              # input block (double-buffered)
        + S * bb * _lane_pad(H) * msize                # inter-layer hidden seq scratch
        + t_chunk * bb * _lane_pad(4 * H) * 4          # xg scratch (f32)
        + 2 * bb * _lane_pad(K) * 4                    # output block
    )
    for lp in params["layers"]:
        in_dim = lp["w_ih"].shape[0]
        vmem_est += 2 * (_round_up(in_dim, 8) + _round_up(H, 8) + 8) * _lane_pad(4 * H) * msize
    vmem_est += 2 * (_round_up(H, 8) + 8) * _lane_pad(K) * 4
    vmem_limit = int(min(max(2 * vmem_est, 32 * 2 ** 20), 64 * 2 ** 20))

    out = pl.pallas_call(
        _make_robustlog_kernel(num_layers, H, t_chunk, num_chunks, unroll),
        out_shape=jax.ShapeDtypeStruct((B_pad, K), jnp.float32),
        grid_spec=pltpu.PrefetchScalarGridSpec(
            num_scalar_prefetch=0,
            grid=(B_pad // bb,),                       # parallel over batch blocks
            in_specs=in_specs,
            out_specs=pl.BlockSpec((bb, K), lambda j: (j, 0)),
            scratch_shapes=[
                pltpu.VMEM((S, bb, H), mdt),           # inter-layer hidden sequence
                pltpu.VMEM((t_chunk, bb, 4 * H), jnp.float32),  # chunked input proj
            ],
        ),
        compiler_params=pltpu.CompilerParams(
            dimension_semantics=("parallel",),
            vmem_limit_bytes=vmem_limit,
        ),
    )(*inputs)
    return out[:B]


# -------------------- PyTorch-format params -> kernel params -------------------

def _reorder_ifgo_to_ifog(w, axis=0):
    i, f, g, o = jnp.split(w, 4, axis=axis)
    return jnp.concatenate([i, f, o, g], axis=axis)


def prepare_kernel_params(torch_params):
    """Convert PyTorch-layout LSTM/FC weights into the kernel's packed layout."""
    layers = []
    for lp in torch_params["lstm"]:
        w_ih = _reorder_ifgo_to_ifog(lp["weight_ih"], axis=0).T     # (in_dim, 4H)
        w_hh = _reorder_ifgo_to_ifog(lp["weight_hh"], axis=0).T     # (H, 4H)
        b = _reorder_ifgo_to_ifog(lp["bias_ih"] + lp["bias_hh"], axis=0)
        layers.append({"w_ih": w_ih, "w_hh": w_hh, "b": b.reshape(1, -1)})
    return {
        "layers": layers,
        "w_fc": torch_params["fc"]["weight"].T,                     # (H, K)
        "b_fc": torch_params["fc"]["bias"].reshape(1, -1),          # (1, K)
    }


def init_torch_params(key, input_size, hidden_size, num_layers, num_keys):
    """Deterministic init mimicking PyTorch uniform(-1/sqrt(H), 1/sqrt(H))."""
    k = 1.0 / float(hidden_size) ** 0.5
    params = {"lstm": [], "fc": {}}
    for layer in range(num_layers):
        in_dim = input_size if layer == 0 else hidden_size
        key, k1, k2, k3, k4 = jax.random.split(key, 5)
        params["lstm"].append({
            "weight_ih": jax.random.uniform(k1, (4 * hidden_size, in_dim), jnp.float32, -k, k),
            "weight_hh": jax.random.uniform(k2, (4 * hidden_size, hidden_size), jnp.float32, -k, k),
            "bias_ih": jax.random.uniform(k3, (4 * hidden_size,), jnp.float32, -k, k),
            "bias_hh": jax.random.uniform(k4, (4 * hidden_size,), jnp.float32, -k, k),
        })
    key, k5, k6 = jax.random.split(key, 3)
    params["fc"] = {
        "weight": jax.random.uniform(k5, (num_keys, hidden_size), jnp.float32, -k, k),
        "bias": jax.random.uniform(k6, (num_keys,), jnp.float32, -k, k),
    }
    return params


# --------------------------- Pure-JAX reference check --------------------------

def robustlog_reference(features0, torch_params):
    """Direct translation of nn.LSTM(batch_first=True) + nn.Linear, gate order [i,f,g,o]."""
    x = features0.astype(jnp.float32)                 # (B, S, I)
    B, S, _ = x.shape
    for lp in torch_params["lstm"]:
        H = lp["weight_hh"].shape[1]
        h = jnp.zeros((B, H), jnp.float32)
        c = jnp.zeros((B, H), jnp.float32)
        outs = []
        for t in range(S):
            g = (x[:, t, :] @ lp["weight_ih"].T + h @ lp["weight_hh"].T
                 + lp["bias_ih"] + lp["bias_hh"])
            i = jax.nn.sigmoid(g[:, 0 * H:1 * H])
            f = jax.nn.sigmoid(g[:, 1 * H:2 * H])
            gg = jnp.tanh(g[:, 2 * H:3 * H])
            o = jax.nn.sigmoid(g[:, 3 * H:4 * H])
            c = f * c + i * gg
            h = o * jnp.tanh(c)
            outs.append(h)
        x = jnp.stack(outs, axis=1)                   # (B, S, H)
    return x[:, -1, :] @ torch_params["fc"]["weight"].T + torch_params["fc"]["bias"]


# ------------------------------------ Main -------------------------------------

if __name__ == "__main__":
    input_size, hidden_size, num_layers, num_keys = 16, 32, 2, 10
    batch, seq = 2, 8

    key = jax.random.PRNGKey(0)
    key, pkey, xkey = jax.random.split(key, 3)
    torch_params = init_torch_params(pkey, input_size, hidden_size, num_layers, num_keys)
    kparams = prepare_kernel_params(torch_params)

    # features is a list in the PyTorch module; forward uses features[0].
    features0 = jax.random.normal(xkey, (batch, seq, input_size), jnp.float32)

    # Production path: bf16 on the MXU-facing tensors, f32 accumulation/gates.
    out_bf16 = jax.block_until_ready(robustlog_forward(features0, kparams))
    # Tight numerical check path: everything f32.
    out_f32 = jax.block_until_ready(
        robustlog_forward(features0, kparams, matmul_dtype=jnp.float32))

    ref = robustlog_reference(features0, torch_params)
    assert out_bf16.shape == (batch, num_keys), f"bad shape {out_bf16.shape}"
    assert jnp.allclose(out_f32, ref, atol=5e-4, rtol=5e-4), "f32 mismatch vs reference"
    assert jnp.allclose(out_bf16, ref, atol=6e-2, rtol=6e-2), "bf16 mismatch vs reference"

    print("KERNEL_OK")
</pallas_src>

<mosaic_0001>
module attributes {stable_mosaic.version = 11 : i64} {
  func.func @kernel(%arg0: i32, %arg1: memref<8x8x16xbf16, #tpu.memory_space<vmem>>, %arg2: memref<16x128xbf16, #tpu.memory_space<vmem>>, %arg3: memref<32x128xbf16, #tpu.memory_space<vmem>>, %arg4: memref<1x128xf32, #tpu.memory_space<vmem>>, %arg5: memref<32x128xbf16, #tpu.memory_space<vmem>>, %arg6: memref<32x128xbf16, #tpu.memory_space<vmem>>, %arg7: memref<1x128xf32, #tpu.memory_space<vmem>>, %arg8: memref<32x10xbf16, #tpu.memory_space<vmem>>, %arg9: memref<1x10xf32, #tpu.memory_space<vmem>>, %arg10: memref<8x10xf32, #tpu.memory_space<vmem>>, %arg11: memref<8x8x32xbf16, #tpu.memory_space<vmem>>, %arg12: memref<8x8x128xf32, #tpu.memory_space<vmem>>) attributes {dimension_semantics = [#tpu.dimension_semantics<parallel>], iteration_bounds = array<i64: 1>, scalar_prefetch = 0 : i64, scratch_operands = 2 : i64, tpu.core_type = #tpu.core_type<tc>, window_params = [{transform_indices = @transform_0, window_bounds = array<i64: 8, 8, 16>}, {pipeline_mode = #tpu.pipeline_mode<synchronous>, transform_indices = @transform_1, window_bounds = array<i64: 16, 128>}, {pipeline_mode = #tpu.pipeline_mode<synchronous>, transform_indices = @transform_2, window_bounds = array<i64: 32, 128>}, {pipeline_mode = #tpu.pipeline_mode<synchronous>, transform_indices = @transform_3, window_bounds = array<i64: 1, 128>}, {pipeline_mode = #tpu.pipeline_mode<synchronous>, transform_indices = @transform_4, window_bounds = array<i64: 32, 128>}, {pipeline_mode = #tpu.pipeline_mode<synchronous>, transform_indices = @transform_5, window_bounds = array<i64: 32, 128>}, {pipeline_mode = #tpu.pipeline_mode<synchronous>, transform_indices = @transform_6, window_bounds = array<i64: 1, 128>}, {pipeline_mode = #tpu.pipeline_mode<synchronous>, transform_indices = @transform_7, window_bounds = array<i64: 32, 10>}, {pipeline_mode = #tpu.pipeline_mode<synchronous>, transform_indices = @transform_8, window_bounds = array<i64: 1, 10>}, {transform_indices = @transform_9, window_bounds = array<i64: 8, 10>}]} {
    %c0 = arith.constant 0 : index
    %c0_0 = arith.constant 0 : index
    %0 = vector.load %arg2[%c0, %c0_0] : memref<16x128xbf16, #tpu.memory_space<vmem>>, vector<16x128xbf16>
    %c0_1 = arith.constant 0 : index
    %c0_2 = arith.constant 0 : index
    %1 = vector.load %arg3[%c0_1, %c0_2] : memref<32x128xbf16, #tpu.memory_space<vmem>>, vector<32x128xbf16>
    %c0_3 = arith.constant 0 : index
    %c0_4 = arith.constant 0 : index
    %2 = vector.load %arg4[%c0_3, %c0_4] : memref<1x128xf32, #tpu.memory_space<vmem>>, vector<1x128xf32>
    %cst = arith.constant 0.000000e+00 : f32
    %3 = vector.broadcast %cst : f32 to vector<8x32xf32>
    %cst_5 = arith.constant 0.000000e+00 : f32
    %4 = vector.broadcast %cst_5 : f32 to vector<8x32xf32>
    %c0_6 = arith.constant 0 : index
    %c0_7 = arith.constant 0 : index
    %c0_8 = arith.constant 0 : index
    %5 = vector.load %arg1[%c0_6, %c0_7, %c0_8] : memref<8x8x16xbf16, #tpu.memory_space<vmem>>, vector<8x8x16xbf16>
    %6 = vector.shape_cast %5 : vector<8x8x16xbf16> to vector<64x16xbf16>
    %cst_9 = arith.constant dense<0.000000e+00> : vector<64x128xf32>
    %7 = tpu.matmul %6, %0, %cst_9 {dimension_numbers = #tpu.dot_dimension_numbers<[1], [0], [0], [1], [0, 0, 1, 1], [], []>} : vector<64x16xbf16>, vector<16x128xbf16>, vector<64x128xf32> -> vector<64x128xf32>
    %8 = vector.broadcast %2 : vector<1x128xf32> to vector<64x128xf32>
    %9 = arith.addf %7, %8 : vector<64x128xf32>
    %10 = vector.shape_cast %9 : vector<64x128xf32> to vector<8x8x128xf32>
    %c0_10 = arith.constant 0 : index
    %c0_11 = arith.constant 0 : index
    %c0_12 = arith.constant 0 : index
    %11 = vector.load %arg12[%c0_10, %c0_11, %c0_12] : memref<8x8x128xf32, #tpu.memory_space<vmem>>, vector<8x8x128xf32>
    tpu.vector_store %arg12[%c0_10, %c0_11, %c0_12], %10 {strides = array<i32>} : memref<8x8x128xf32, #tpu.memory_space<vmem>>, vector<8x8x128xf32>,
    %c0_i32 = arith.constant 0 : i32
    %12 = arith.index_cast %c0_i32 : i32 to index
    %c0_13 = arith.constant 0 : index
    %c0_14 = arith.constant 0 : index
    %13 = vector.load %arg12[%12, %c0_13, %c0_14] : memref<8x8x128xf32, #tpu.memory_space<vmem>>, vector<1x8x128xf32>
    %14 = vector.shape_cast %13 : vector<1x8x128xf32> to vector<8x128xf32>
    %15 = arith.truncf %3 : vector<8x32xf32> to vector<8x32xbf16>
    %cst_15 = arith.constant dense<0.000000e+00> : vector<8x128xf32>
    %16 = tpu.matmul %15, %1, %cst_15 {dimension_numbers = #tpu.dot_dimension_numbers<[1], [0], [0], [1], [0, 0, 1, 1], [], []>} : vector<8x32xbf16>, vector<32x128xbf16>, vector<8x128xf32> -> vector<8x128xf32>
    %17 = arith.addf %14, %16 : vector<8x128xf32>
    %18 = vector.extract_strided_slice %17 {offsets = [0, 0], sizes = [8, 96], strides = [1, 1]} : vector<8x128xf32> to vector<8x96xf32>
    %19 = arith.negf %18 : vector<8x96xf32>
    %20 = math.exp %19 : vector<8x96xf32>
    %cst_16 = arith.constant 1.000000e+00 : f32
    %21 = vector.broadcast %cst_16 : f32 to vector<8x96xf32>
    %22 = arith.addf %21, %20 : vector<8x96xf32>
    %23 = arith.divf %21, %22 : vector<8x96xf32>
    %24 = vector.extract_strided_slice %23 {offsets = [0, 0], sizes = [8, 32], strides = [1, 1]} : vector<8x96xf32> to vector<8x32xf32>
    %25 = vector.extract_strided_slice %23 {offsets = [0, 32], sizes = [8, 32], strides = [1, 1]} : vector<8x96xf32> to vector<8x32xf32>
    %26 = vector.extract_strided_slice %23 {offsets = [0, 64], sizes = [8, 32], strides = [1, 1]} : vector<8x96xf32> to vector<8x32xf32>
    %27 = vector.extract_strided_slice %17 {offsets = [0, 96], sizes = [8, 32], strides = [1, 1]} : vector<8x128xf32> to vector<8x32xf32>
    %28 = math.tanh %27 : vector<8x32xf32>
    %29 = arith.mulf %25, %4 : vector<8x32xf32>
    %30 = arith.mulf %24, %28 : vector<8x32xf32>
    %31 = arith.addf %29, %30 : vector<8x32xf32>
    %32 = math.tanh %31 : vector<8x32xf32>
    %33 = arith.mulf %26, %32 : vector<8x32xf32>
    %34 = arith.truncf %33 : vector<8x32xf32> to vector<8x32xbf16>
    %c0_i32_17 = arith.constant 0 : i32
    %35 = arith.addi %c0_i32_17, %c0_i32 : i32
    %36 = arith.index_cast %35 : i32 to index
    %c0_18 = arith.constant 0 : index
    %c0_19 = arith.constant 0 : index
    %37 = vector.load %arg11[%36, %c0_18, %c0_19] : memref<8x8x32xbf16, #tpu.memory_space<vmem>>, vector<1x8x32xbf16>
    %38 = vector.shape_cast %37 : vector<1x8x32xbf16> to vector<8x32xbf16>
    %39 = vector.shape_cast %34 : vector<8x32xbf16> to vector<1x8x32xbf16>
    tpu.vector_store %arg11[%36, %c0_18, %c0_19], %39 {strides = array<i32>} : memref<8x8x32xbf16, #tpu.memory_space<vmem>>, vector<1x8x32xbf16>,
    %c1_i32 = arith.constant 1 : i32
    %40 = arith.index_cast %c1_i32 : i32 to index
    %c0_20 = arith.constant 0 : index
    %c0_21 = arith.constant 0 : index
    %41 = vector.load %arg12[%40, %c0_20, %c0_21] : memref<8x8x128xf32, #tpu.memory_space<vmem>>, vector<1x8x128xf32>
    %42 = vector.shape_cast %41 : vector<1x8x128xf32> to vector<8x128xf32>
    %43 = arith.truncf %33 : vector<8x32xf32> to vector<8x32xbf16>
    %cst_22 = arith.constant dense<0.000000e+00> : vector<8x128xf32>
    %44 = tpu.matmul %43, %1, %cst_22 {dimension_numbers = #tpu.dot_dimension_numbers<[1], [0], [0], [1], [0, 0, 1, 1], [], []>} : vector<8x32xbf16>, vector<32x128xbf16>, vector<8x128xf32> -> vector<8x128xf32>
    %45 = arith.addf %42, %44 : vector<8x128xf32>
    %46 = vector.extract_strided_slice %45 {offsets = [0, 0], sizes = [8, 96], strides = [1, 1]} : vector<8x128xf32> to vector<8x96xf32>
    %47 = arith.negf %46 : vector<8x96xf32>
    %48 = math.exp %47 : vector<8x96xf32>
    %cst_23 = arith.constant 1.000000e+00 : f32
    %49 = vector.broadcast %cst_23 : f32 to vector<8x96xf32>
    %50 = arith.addf %49, %48 : vector<8x96xf32>
    %51 = arith.divf %49, %50 : vector<8x96xf32>
    %52 = vector.extract_strided_slice %51 {offsets = [0, 0], sizes = [8, 32], strides = [1, 1]} : vector<8x96xf32> to vector<8x32xf32>
    %53 = vector.extract_strided_slice %51 {offsets = [0, 32], sizes = [8, 32], strides = [1, 1]} : vector<8x96xf32> to vector<8x32xf32>
    %54 = vector.extract_strided_slice %51 {offsets = [0, 64], sizes = [8, 32], strides = [1, 1]} : vector<8x96xf32> to vector<8x32xf32>
    %55 = vector.extract_strided_slice %45 {offsets = [0, 96], sizes = [8, 32], strides = [1, 1]} : vector<8x128xf32> to vector<8x32xf32>
    %56 = math.tanh %55 : vector<8x32xf32>
    %57 = arith.mulf %53, %31 : vector<8x32xf32>
    %58 = arith.mulf %52, %56 : vector<8x32xf32>
    %59 = arith.addf %57, %58 : vector<8x32xf32>
    %60 = math.tanh %59 : vector<8x32xf32>
    %61 = arith.mulf %54, %60 : vector<8x32xf32>
    %62 = arith.truncf %61 : vector<8x32xf32> to vector<8x32xbf16>
    %c0_i32_24 = arith.constant 0 : i32
    %63 = arith.addi %c0_i32_24, %c1_i32 : i32
    %64 = arith.index_cast %63 : i32 to index
    %c0_25 = arith.constant 0 : index
    %c0_26 = arith.constant 0 : index
    %65 = vector.load %arg11[%64, %c0_25, %c0_26] : memref<8x8x32xbf16, #tpu.memory_space<vmem>>, vector<1x8x32xbf16>
    %66 = vector.shape_cast %65 : vector<1x8x32xbf16> to vector<8x32xbf16>
    %67 = vector.shape_cast %62 : vector<8x32xbf16> to vector<1x8x32xbf16>
    tpu.vector_store %arg11[%64, %c0_25, %c0_26], %67 {strides = array<i32>} : memref<8x8x32xbf16, #tpu.memory_space<vmem>>, vector<1x8x32xbf16>,
    %c2_i32 = arith.constant 2 : i32
    %68 = arith.index_cast %c2_i32 : i32 to index
    %c0_27 = arith.constant 0 : index
    %c0_28 = arith.constant 0 : index
    %69 = vector.load %arg12[%68, %c0_27, %c0_28] : memref<8x8x128xf32, #tpu.memory_space<vmem>>, vector<1x8x128xf32>
    %70 = vector.shape_cast %69 : vector<1x8x128xf32> to vector<8x128xf32>
    %71 = arith.truncf %61 : vector<8x32xf32> to vector<8x32xbf16>
    %cst_29 = arith.constant dense<0.000000e+00> : vector<8x128xf32>
    %72 = tpu.matmul %71, %1, %cst_29 {dimension_numbers = #tpu.dot_dimension_numbers<[1], [0], [0], [1], [0, 0, 1, 1], [], []>} : vector<8x32xbf16>, vector<32x128xbf16>, vector<8x128xf32> -> vector<8x128xf32>
    %73 = arith.addf %70, %72 : vector<8x128xf32>
    %74 = vector.extract_strided_slice %73 {offsets = [0, 0], sizes = [8, 96], strides = [1, 1]} : vector<8x128xf32> to vector<8x96xf32>
    %75 = arith.negf %74 : vector<8x96xf32>
    %76 = math.exp %75 : vector<8x96xf32>
    %cst_30 = arith.constant 1.000000e+00 : f32
    %77 = vector.broadcast %cst_30 : f32 to vector<8x96xf32>
    %78 = arith.addf %77, %76 : vector<8x96xf32>
    %79 = arith.divf %77, %78 : vector<8x96xf32>
    %80 = vector.extract_strided_slice %79 {offsets = [0, 0], sizes = [8, 32], strides = [1, 1]} : vector<8x96xf32> to vector<8x32xf32>
    %81 = vector.extract_strided_slice %79 {offsets = [0, 32], sizes = [8, 32], strides = [1, 1]} : vector<8x96xf32> to vector<8x32xf32>
    %82 = vector.extract_strided_slice %79 {offsets = [0, 64], sizes = [8, 32], strides = [1, 1]} : vector<8x96xf32> to vector<8x32xf32>
    %83 = vector.extract_strided_slice %73 {offsets = [0, 96], sizes = [8, 32], strides = [1, 1]} : vector<8x128xf32> to vector<8x32xf32>
    %84 = math.tanh %83 : vector<8x32xf32>
    %85 = arith.mulf %81, %59 : vector<8x32xf32>
    %86 = arith.mulf %80, %84 : vector<8x32xf32>
    %87 = arith.addf %85, %86 : vector<8x32xf32>
    %88 = math.tanh %87 : vector<8x32xf32>
    %89 = arith.mulf %82, %88 : vector<8x32xf32>
    %90 = arith.truncf %89 : vector<8x32xf32> to vector<8x32xbf16>
    %c0_i32_31 = arith.constant 0 : i32
    %91 = arith.addi %c0_i32_31, %c2_i32 : i32
    %92 = arith.index_cast %91 : i32 to index
    %c0_32 = arith.constant 0 : index
    %c0_33 = arith.constant 0 : index
    %93 = vector.load %arg11[%92, %c0_32, %c0_33] : memref<8x8x32xbf16, #tpu.memory_space<vmem>>, vector<1x8x32xbf16>
    %94 = vector.shape_cast %93 : vector<1x8x32xbf16> to vector<8x32xbf16>
    %95 = vector.shape_cast %90 : vector<8x32xbf16> to vector<1x8x32xbf16>
    tpu.vector_store %arg11[%92, %c0_32, %c0_33], %95 {strides = array<i32>} : memref<8x8x32xbf16, #tpu.memory_space<vmem>>, vector<1x8x32xbf16>,
    %c3_i32 = arith.constant 3 : i32
    %96 = arith.index_cast %c3_i32 : i32 to index
    %c0_34 = arith.constant 0 : index
    %c0_35 = arith.constant 0 : index
    %97 = vector.load %arg12[%96, %c0_34, %c0_35] : memref<8x8x128xf32, #tpu.memory_space<vmem>>, vector<1x8x128xf32>
    %98 = vector.shape_cast %97 : vector<1x8x128xf32> to vector<8x128xf32>
    %99 = arith.truncf %89 : vector<8x32xf32> to vector<8x32xbf16>
    %cst_36 = arith.constant dense<0.000000e+00> : vector<8x128xf32>
    %100 = tpu.matmul %99, %1, %cst_36 {dimension_numbers = #tpu.dot_dimension_numbers<[1], [0], [0], [1], [0, 0, 1, 1], [], []>} : vector<8x32xbf16>, vector<32x128xbf16>, vector<8x128xf32> -> vector<8x128xf32>
    %101 = arith.addf %98, %100 : vector<8x128xf32>
    %102 = vector.extract_strided_slice %101 {offsets = [0, 0], sizes = [8, 96], strides = [1, 1]} : vector<8x128xf32> to vector<8x96xf32>
    %103 = arith.negf %102 : vector<8x96xf32>
    %104 = math.exp %103 : vector<8x96xf32>
    %cst_37 = arith.constant 1.000000e+00 : f32
    %105 = vector.broadcast %cst_37 : f32 to vector<8x96xf32>
    %106 = arith.addf %105, %104 : vector<8x96xf32>
    %107 = arith.divf %105, %106 : vector<8x96xf32>
    %108 = vector.extract_strided_slice %107 {offsets = [0, 0], sizes = [8, 32], strides = [1, 1]} : vector<8x96xf32> to vector<8x32xf32>
    %109 = vector.extract_strided_slice %107 {offsets = [0, 32], sizes = [8, 32], strides = [1, 1]} : vector<8x96xf32> to vector<8x32xf32>
    %110 = vector.extract_strided_slice %107 {offsets = [0, 64], sizes = [8, 32], strides = [1, 1]} : vector<8x96xf32> to vector<8x32xf32>
    %111 = vector.extract_strided_slice %101 {offsets = [0, 96], sizes = [8, 32], strides = [1, 1]} : vector<8x128xf32> to vector<8x32xf32>
    %112 = math.tanh %111 : vector<8x32xf32>
    %113 = arith.mulf %109, %87 : vector<8x32xf32>
    %114 = arith.mulf %108, %112 : vector<8x32xf32>
    %115 = arith.addf %113, %114 : vector<8x32xf32>
    %116 = math.tanh %115 : vector<8x32xf32>
    %117 = arith.mulf %110, %116 : vector<8x32xf32>
    %118 = arith.truncf %117 : vector<8x32xf32> to vector<8x32xbf16>
    %c0_i32_38 = arith.constant 0 : i32
    %119 = arith.addi %c0_i32_38, %c3_i32 : i32
    %120 = arith.index_cast %119 : i32 to index
    %c0_39 = arith.constant 0 : index
    %c0_40 = arith.constant 0 : index
    %121 = vector.load %arg11[%120, %c0_39, %c0_40] : memref<8x8x32xbf16, #tpu.memory_space<vmem>>, vector<1x8x32xbf16>
    %122 = vector.shape_cast %121 : vector<1x8x32xbf16> to vector<8x32xbf16>
    %123 = vector.shape_cast %118 : vector<8x32xbf16> to vector<1x8x32xbf16>
    tpu.vector_store %arg11[%120, %c0_39, %c0_40], %123 {strides = array<i32>} : memref<8x8x32xbf16, #tpu.memory_space<vmem>>, vector<1x8x32xbf16>,
    %c4_i32 = arith.constant 4 : i32
    %124 = arith.index_cast %c4_i32 : i32 to index
    %c0_41 = arith.constant 0 : index
    %c0_42 = arith.constant 0 : index
    %125 = vector.load %arg12[%124, %c0_41, %c0_42] : memref<8x8x128xf32, #tpu.memory_space<vmem>>, vector<1x8x128xf32>
    %126 = vector.shape_cast %125 : vector<1x8x128xf32> to vector<8x128xf32>
    %127 = arith.truncf %117 : vector<8x32xf32> to vector<8x32xbf16>
    %cst_43 = arith.constant dense<0.000000e+00> : vector<8x128xf32>
    %128 = tpu.matmul %127, %1, %cst_43 {dimension_numbers = #tpu.dot_dimension_numbers<[1], [0], [0], [1], [0, 0, 1, 1], [], []>} : vector<8x32xbf16>, vector<32x128xbf16>, vector<8x128xf32> -> vector<8x128xf32>
    %129 = arith.addf %126, %128 : vector<8x128xf32>
    %130 = vector.extract_strided_slice %129 {offsets = [0, 0], sizes = [8, 96], strides = [1, 1]} : vector<8x128xf32> to vector<8x96xf32>
    %131 = arith.negf %130 : vector<8x96xf32>
    %132 = math.exp %131 : vector<8x96xf32>
    %cst_44 = arith.constant 1.000000e+00 : f32
    %133 = vector.broadcast %cst_44 : f32 to vector<8x96xf32>
    %134 = arith.addf %133, %132 : vector<8x96xf32>
    %135 = arith.divf %133, %134 : vector<8x96xf32>
    %136 = vector.extract_strided_slice %135 {offsets = [0, 0], sizes = [8, 32], strides = [1, 1]} : vector<8x96xf32> to vector<8x32xf32>
    %137 = vector.extract_strided_slice %135 {offsets = [0, 32], sizes = [8, 32], strides = [1, 1]} : vector<8x96xf32> to vector<8x32xf32>
    %138 = vector.extract_strided_slice %135 {offsets = [0, 64], sizes = [8, 32], strides = [1, 1]} : vector<8x96xf32> to vector<8x32xf32>
    %139 = vector.extract_strided_slice %129 {offsets = [0, 96], sizes = [8, 32], strides = [1, 1]} : vector<8x128xf32> to vector<8x32xf32>
    %140 = math.tanh %139 : vector<8x32xf32>
    %141 = arith.mulf %137, %115 : vector<8x32xf32>
    %142 = arith.mulf %136, %140 : vector<8x32xf32>
    %143 = arith.addf %141, %142 : vector<8x32xf32>
    %144 = math.tanh %143 : vector<8x32xf32>
    %145 = arith.mulf %138, %144 : vector<8x32xf32>
    %146 = arith.truncf %145 : vector<8x32xf32> to vector<8x32xbf16>
    %c0_i32_45 = arith.constant 0 : i32
    %147 = arith.addi %c0_i32_45, %c4_i32 : i32
    %148 = arith.index_cast %147 : i32 to index
    %c0_46 = arith.constant 0 : index
    %c0_47 = arith.constant 0 : index
    %149 = vector.load %arg11[%148, %c0_46, %c0_47] : memref<8x8x32xbf16, #tpu.memory_space<vmem>>, vector<1x8x32xbf16>
    %150 = vector.shape_cast %149 : vector<1x8x32xbf16> to vector<8x32xbf16>
    %151 = vector.shape_cast %146 : vector<8x32xbf16> to vector<1x8x32xbf16>
    tpu.vector_store %arg11[%148, %c0_46, %c0_47], %151 {strides = array<i32>} : memref<8x8x32xbf16, #tpu.memory_space<vmem>>, vector<1x8x32xbf16>,
    %c5_i32 = arith.constant 5 : i32
    %152 = arith.index_cast %c5_i32 : i32 to index
    %c0_48 = arith.constant 0 : index
    %c0_49 = arith.constant 0 : index
    %153 = vector.load %arg12[%152, %c0_48, %c0_49] : memref<8x8x128xf32, #tpu.memory_space<vmem>>, vector<1x8x128xf32>
    %154 = vector.shape_cast %153 : vector<1x8x128xf32> to vector<8x128xf32>
    %155 = arith.truncf %145 : vector<8x32xf32> to vector<8x32xbf16>
    %cst_50 = arith.constant dense<0.000000e+00> : vector<8x128xf32>
    %156 = tpu.matmul %155, %1, %cst_50 {dimension_numbers = #tpu.dot_dimension_numbers<[1], [0], [0], [1], [0, 0, 1, 1], [], []>} : vector<8x32xbf16>, vector<32x128xbf16>, vector<8x128xf32> -> vector<8x128xf32>
    %157 = arith.addf %154, %156 : vector<8x128xf32>
    %158 = vector.extract_strided_slice %157 {offsets = [0, 0], sizes = [8, 96], strides = [1, 1]} : vector<8x128xf32> to vector<8x96xf32>
    %159 = arith.negf %158 : vector<8x96xf32>
    %160 = math.exp %159 : vector<8x96xf32>
    %cst_51 = arith.constant 1.000000e+00 : f32
    %161 = vector.broadcast %cst_51 : f32 to vector<8x96xf32>
    %162 = arith.addf %161, %160 : vector<8x96xf32>
    %163 = arith.divf %161, %162 : vector<8x96xf32>
    %164 = vector.extract_strided_slice %163 {offsets = [0, 0], sizes = [8, 32], strides = [1, 1]} : vector<8x96xf32> to vector<8x32xf32>
    %165 = vector.extract_strided_slice %163 {offsets = [0, 32], sizes = [8, 32], strides = [1, 1]} : vector<8x96xf32> to vector<8x32xf32>
    %166 = vector.extract_strided_slice %163 {offsets = [0, 64], sizes = [8, 32], strides = [1, 1]} : vector<8x96xf32> to vector<8x32xf32>
    %167 = vector.extract_strided_slice %157 {offsets = [0, 96], sizes = [8, 32], strides = [1, 1]} : vector<8x128xf32> to vector<8x32xf32>
    %168 = math.tanh %167 : vector<8x32xf32>
    %169 = arith.mulf %165, %143 : vector<8x32xf32>
    %170 = arith.mulf %164, %168 : vector<8x32xf32>
    %171 = arith.addf %169, %170 : vector<8x32xf32>
    %172 = math.tanh %171 : vector<8x32xf32>
    %173 = arith.mulf %166, %172 : vector<8x32xf32>
    %174 = arith.truncf %173 : vector<8x32xf32> to vector<8x32xbf16>
    %c0_i32_52 = arith.constant 0 : i32
    %175 = arith.addi %c0_i32_52, %c5_i32 : i32
    %176 = arith.index_cast %175 : i32 to index
    %c0_53 = arith.constant 0 : index
    %c0_54 = arith.constant 0 : index
    %177 = vector.load %arg11[%176, %c0_53, %c0_54] : memref<8x8x32xbf16, #tpu.memory_space<vmem>>, vector<1x8x32xbf16>
    %178 = vector.shape_cast %177 : vector<1x8x32xbf16> to vector<8x32xbf16>
    %179 = vector.shape_cast %174 : vector<8x32xbf16> to vector<1x8x32xbf16>
    tpu.vector_store %arg11[%176, %c0_53, %c0_54], %179 {strides = array<i32>} : memref<8x8x32xbf16, #tpu.memory_space<vmem>>, vector<1x8x32xbf16>,
    %c6_i32 = arith.constant 6 : i32
    %180 = arith.index_cast %c6_i32 : i32 to index
    %c0_55 = arith.constant 0 : index
    %c0_56 = arith.constant 0 : index
    %181 = vector.load %arg12[%180, %c0_55, %c0_56] : memref<8x8x128xf32, #tpu.memory_space<vmem>>, vector<1x8x128xf32>
    %182 = vector.shape_cast %181 : vector<1x8x128xf32> to vector<8x128xf32>
    %183 = arith.truncf %173 : vector<8x32xf32> to vector<8x32xbf16>
    %cst_57 = arith.constant dense<0.000000e+00> : vector<8x128xf32>
    %184 = tpu.matmul %183, %1, %cst_57 {dimension_numbers = #tpu.dot_dimension_numbers<[1], [0], [0], [1], [0, 0, 1, 1], [], []>} : vector<8x32xbf16>, vector<32x128xbf16>, vector<8x128xf32> -> vector<8x128xf32>
    %185 = arith.addf %182, %184 : vector<8x128xf32>
    %186 = vector.extract_strided_slice %185 {offsets = [0, 0], sizes = [8, 96], strides = [1, 1]} : vector<8x128xf32> to vector<8x96xf32>
    %187 = arith.negf %186 : vector<8x96xf32>
    %188 = math.exp %187 : vector<8x96xf32>
    %cst_58 = arith.constant 1.000000e+00 : f32
    %189 = vector.broadcast %cst_58 : f32 to vector<8x96xf32>
    %190 = arith.addf %189, %188 : vector<8x96xf32>
    %191 = arith.divf %189, %190 : vector<8x96xf32>
    %192 = vector.extract_strided_slice %191 {offsets = [0, 0], sizes = [8, 32], strides = [1, 1]} : vector<8x96xf32> to vector<8x32xf32>
    %193 = vector.extract_strided_slice %191 {offsets = [0, 32], sizes = [8, 32], strides = [1, 1]} : vector<8x96xf32> to vector<8x32xf32>
    %194 = vector.extract_strided_slice %191 {offsets = [0, 64], sizes = [8, 32], strides = [1, 1]} : vector<8x96xf32> to vector<8x32xf32>
    %195 = vector.extract_strided_slice %185 {offsets = [0, 96], sizes = [8, 32], strides = [1, 1]} : vector<8x128xf32> to vector<8x32xf32>
    %196 = math.tanh %195 : vector<8x32xf32>
    %197 = arith.mulf %193, %171 : vector<8x32xf32>
    %198 = arith.mulf %192, %196 : vector<8x32xf32>
    %199 = arith.addf %197, %198 : vector<8x32xf32>
    %200 = math.tanh %199 : vector<8x32xf32>
    %201 = arith.mulf %194, %200 : vector<8x32xf32>
    %202 = arith.truncf %201 : vector<8x32xf32> to vector<8x32xbf16>
    %c0_i32_59 = arith.constant 0 : i32
    %203 = arith.addi %c0_i32_59, %c6_i32 : i32
    %204 = arith.index_cast %203 : i32 to index
    %c0_60 = arith.constant 0 : index
    %c0_61 = arith.constant 0 : index
    %205 = vector.load %arg11[%204, %c0_60, %c0_61] : memref<8x8x32xbf16, #tpu.memory_space<vmem>>, vector<1x8x32xbf16>
    %206 = vector.shape_cast %205 : vector<1x8x32xbf16> to vector<8x32xbf16>
    %207 = vector.shape_cast %202 : vector<8x32xbf16> to vector<1x8x32xbf16>
    tpu.vector_store %arg11[%204, %c0_60, %c0_61], %207 {strides = array<i32>} : memref<8x8x32xbf16, #tpu.memory_space<vmem>>, vector<1x8x32xbf16>,
    %c7_i32 = arith.constant 7 : i32
    %208 = arith.index_cast %c7_i32 : i32 to index
    %c0_62 = arith.constant 0 : index
    %c0_63 = arith.constant 0 : index
    %209 = vector.load %arg12[%208, %c0_62, %c0_63] : memref<8x8x128xf32, #tpu.memory_space<vmem>>, vector<1x8x128xf32>
    %210 = vector.shape_cast %209 : vector<1x8x128xf32> to vector<8x128xf32>
    %211 = arith.truncf %201 : vector<8x32xf32> to vector<8x32xbf16>
    %cst_64 = arith.constant dense<0.000000e+00> : vector<8x128xf32>
    %212 = tpu.matmul %211, %1, %cst_64 {dimension_numbers = #tpu.dot_dimension_numbers<[1], [0], [0], [1], [0, 0, 1, 1], [], []>} : vector<8x32xbf16>, vector<32x128xbf16>, vector<8x128xf32> -> vector<8x128xf32>
    %213 = arith.addf %210, %212 : vector<8x128xf32>
    %214 = vector.extract_strided_slice %213 {offsets = [0, 0], sizes = [8, 96], strides = [1, 1]} : vector<8x128xf32> to vector<8x96xf32>
    %215 = arith.negf %214 : vector<8x96xf32>
    %216 = math.exp %215 : vector<8x96xf32>
    %cst_65 = arith.constant 1.000000e+00 : f32
    %217 = vector.broadcast %cst_65 : f32 to vector<8x96xf32>
    %218 = arith.addf %217, %216 : vector<8x96xf32>
    %219 = arith.divf %217, %218 : vector<8x96xf32>
    %220 = vector.extract_strided_slice %219 {offsets = [0, 0], sizes = [8, 32], strides = [1, 1]} : vector<8x96xf32> to vector<8x32xf32>
    %221 = vector.extract_strided_slice %219 {offsets = [0, 32], sizes = [8, 32], strides = [1, 1]} : vector<8x96xf32> to vector<8x32xf32>
    %222 = vector.extract_strided_slice %219 {offsets = [0, 64], sizes = [8, 32], strides = [1, 1]} : vector<8x96xf32> to vector<8x32xf32>
    %223 = vector.extract_strided_slice %213 {offsets = [0, 96], sizes = [8, 32], strides = [1, 1]} : vector<8x128xf32> to vector<8x32xf32>
    %224 = math.tanh %223 : vector<8x32xf32>
    %225 = arith.mulf %221, %199 : vector<8x32xf32>
    %226 = arith.mulf %220, %224 : vector<8x32xf32>
    %227 = arith.addf %225, %226 : vector<8x32xf32>
    %228 = math.tanh %227 : vector<8x32xf32>
    %229 = arith.mulf %222, %228 : vector<8x32xf32>
    %230 = arith.truncf %229 : vector<8x32xf32> to vector<8x32xbf16>
    %c0_i32_66 = arith.constant 0 : i32
    %231 = arith.addi %c0_i32_66, %c7_i32 : i32
    %232 = arith.index_cast %231 : i32 to index
    %c0_67 = arith.constant 0 : index
    %c0_68 = arith.constant 0 : index
    %233 = vector.load %arg11[%232, %c0_67, %c0_68] : memref<8x8x32xbf16, #tpu.memory_space<vmem>>, vector<1x8x32xbf16>
    %234 = vector.shape_cast %233 : vector<1x8x32xbf16> to vector<8x32xbf16>
    %235 = vector.shape_cast %230 : vector<8x32xbf16> to vector<1x8x32xbf16>
    tpu.vector_store %arg11[%232, %c0_67, %c0_68], %235 {strides = array<i32>} : memref<8x8x32xbf16, #tpu.memory_space<vmem>>, vector<1x8x32xbf16>,
    %c8_i32 = arith.constant 8 : i32
    %c0_69 = arith.constant 0 : index
    %c0_70 = arith.constant 0 : index
    %236 = vector.load %arg5[%c0_69, %c0_70] : memref<32x128xbf16, #tpu.memory_space<vmem>>, vector<32x128xbf16>
    %c0_71 = arith.constant 0 : index
    %c0_72 = arith.constant 0 : index
    %237 = vector.load %arg6[%c0_71, %c0_72] : memref<32x128xbf16, #tpu.memory_space<vmem>>, vector<32x128xbf16>
    %c0_73 = arith.constant 0 : index
    %c0_74 = arith.constant 0 : index
    %238 = vector.load %arg7[%c0_73, %c0_74] : memref<1x128xf32, #tpu.memory_space<vmem>>, vector<1x128xf32>
    %cst_75 = arith.constant 0.000000e+00 : f32
    %239 = vector.broadcast %cst_75 : f32 to vector<8x32xf32>
    %cst_76 = arith.constant 0.000000e+00 : f32
    %240 = vector.broadcast %cst_76 : f32 to vector<8x32xf32>
    %c0_77 = arith.constant 0 : index
    %c0_78 = arith.constant 0 : index
    %c0_79 = arith.constant 0 : index
    %241 = vector.load %arg11[%c0_77, %c0_78, %c0_79] : memref<8x8x32xbf16, #tpu.memory_space<vmem>>, vector<8x8x32xbf16>
    %242 = vector.shape_cast %241 : vector<8x8x32xbf16> to vector<64x32xbf16>
    %cst_80 = arith.constant dense<0.000000e+00> : vector<64x128xf32>
    %243 = tpu.matmul %242, %236, %cst_80 {dimension_numbers = #tpu.dot_dimension_numbers<[1], [0], [0], [1], [0, 0, 1, 1], [], []>} : vector<64x32xbf16>, vector<32x128xbf16>, vector<64x128xf32> -> vector<64x128xf32>
    %244 = vector.broadcast %238 : vector<1x128xf32> to vector<64x128xf32>
    %245 = arith.addf %243, %244 : vector<64x128xf32>
    %246 = vector.shape_cast %245 : vector<64x128xf32> to vector<8x8x128xf32>
    %c0_81 = arith.constant 0 : index
    %c0_82 = arith.constant 0 : index
    %c0_83 = arith.constant 0 : index
    %247 = vector.load %arg12[%c0_81, %c0_82, %c0_83] : memref<8x8x128xf32, #tpu.memory_space<vmem>>, vector<8x8x128xf32>
    tpu.vector_store %arg12[%c0_81, %c0_82, %c0_83], %246 {strides = array<i32>} : memref<8x8x128xf32, #tpu.memory_space<vmem>>, vector<8x8x128xf32>,
    %c0_i32_84 = arith.constant 0 : i32
    %248 = arith.index_cast %c0_i32_84 : i32 to index
    %c0_85 = arith.constant 0 : index
    %c0_86 = arith.constant 0 : index
    %249 = vector.load %arg12[%248, %c0_85, %c0_86] : memref<8x8x128xf32, #tpu.memory_space<vmem>>, vector<1x8x128xf32>
    %250 = vector.shape_cast %249 : vector<1x8x128xf32> to vector<8x128xf32>
    %251 = arith.truncf %239 : vector<8x32xf32> to vector<8x32xbf16>
    %cst_87 = arith.constant dense<0.000000e+00> : vector<8x128xf32>
    %252 = tpu.matmul %251, %237, %cst_87 {dimension_numbers = #tpu.dot_dimension_numbers<[1], [0], [0], [1], [0, 0, 1, 1], [], []>} : vector<8x32xbf16>, vector<32x128xbf16>, vector<8x128xf32> -> vector<8x128xf32>
    %253 = arith.addf %250, %252 : vector<8x128xf32>
    %254 = vector.extract_strided_slice %253 {offsets = [0, 0], sizes = [8, 96], strides = [1, 1]} : vector<8x128xf32> to vector<8x96xf32>
    %255 = arith.negf %254 : vector<8x96xf32>
    %256 = math.exp %255 : vector<8x96xf32>
    %cst_88 = arith.constant 1.000000e+00 : f32
    %257 = vector.broadcast %cst_88 : f32 to vector<8x96xf32>
    %258 = arith.addf %257, %256 : vector<8x96xf32>
    %259 = arith.divf %257, %258 : vector<8x96xf32>
    %260 = vector.extract_strided_slice %259 {offsets = [0, 0], sizes = [8, 32], strides = [1, 1]} : vector<8x96xf32> to vector<8x32xf32>
    %261 = vector.extract_strided_slice %259 {offsets = [0, 32], sizes = [8, 32], strides = [1, 1]} : vector<8x96xf32> to vector<8x32xf32>
    %262 = vector.extract_strided_slice %259 {offsets = [0, 64], sizes = [8, 32], strides = [1, 1]} : vector<8x96xf32> to vector<8x32xf32>
    %263 = vector.extract_strided_slice %253 {offsets = [0, 96], sizes = [8, 32], strides = [1, 1]} : vector<8x128xf32> to vector<8x32xf32>
    %264 = math.tanh %263 : vector<8x32xf32>
    %265 = arith.mulf %261, %240 : vector<8x32xf32>
    %266 = arith.mulf %260, %264 : vector<8x32xf32>
    %267 = arith.addf %265, %266 : vector<8x32xf32>
    %268 = math.tanh %267 : vector<8x32xf32>
    %269 = arith.mulf %262, %268 : vector<8x32xf32>
    %c1_i32_89 = arith.constant 1 : i32
    %270 = arith.index_cast %c1_i32_89 : i32 to index
    %c0_90 = arith.constant 0 : index
    %c0_91 = arith.constant 0 : index
    %271 = vector.load %arg12[%270, %c0_90, %c0_91] : memref<8x8x128xf32, #tpu.memory_space<vmem>>, vector<1x8x128xf32>
    %272 = vector.shape_cast %271 : vector<1x8x128xf32> to vector<8x128xf32>
    %273 = arith.truncf %269 : vector<8x32xf32> to vector<8x32xbf16>
    %cst_92 = arith.constant dense<0.000000e+00> : vector<8x128xf32>
    %274 = tpu.matmul %273, %237, %cst_92 {dimension_numbers = #tpu.dot_dimension_numbers<[1], [0], [0], [1], [0, 0, 1, 1], [], []>} : vector<8x32xbf16>, vector<32x128xbf16>, vector<8x128xf32> -> vector<8x128xf32>
    %275 = arith.addf %272, %274 : vector<8x128xf32>
    %276 = vector.extract_strided_slice %275 {offsets = [0, 0], sizes = [8, 96], strides = [1, 1]} : vector<8x128xf32> to vector<8x96xf32>
    %277 = arith.negf %276 : vector<8x96xf32>
    %278 = math.exp %277 : vector<8x96xf32>
    %cst_93 = arith.constant 1.000000e+00 : f32
    %279 = vector.broadcast %cst_93 : f32 to vector<8x96xf32>
    %280 = arith.addf %279, %278 : vector<8x96xf32>
    %281 = arith.divf %279, %280 : vector<8x96xf32>
    %282 = vector.extract_strided_slice %281 {offsets = [0, 0], sizes = [8, 32], strides = [1, 1]} : vector<8x96xf32> to vector<8x32xf32>
    %283 = vector.extract_strided_slice %281 {offsets = [0, 32], sizes = [8, 32], strides = [1, 1]} : vector<8x96xf32> to vector<8x32xf32>
    %284 = vector.extract_strided_slice %281 {offsets = [0, 64], sizes = [8, 32], strides = [1, 1]} : vector<8x96xf32> to vector<8x32xf32>
    %285 = vector.extract_strided_slice %275 {offsets = [0, 96], sizes = [8, 32], strides = [1, 1]} : vector<8x128xf32> to vector<8x32xf32>
    %286 = math.tanh %285 : vector<8x32xf32>
    %287 = arith.mulf %283, %267 : vector<8x32xf32>
    %288 = arith.mulf %282, %286 : vector<8x32xf32>
    %289 = arith.addf %287, %288 : vector<8x32xf32>
    %290 = math.tanh %289 : vector<8x32xf32>
    %291 = arith.mulf %284, %290 : vector<8x32xf32>
    %c2_i32_94 = arith.constant 2 : i32
    %292 = arith.index_cast %c2_i32_94 : i32 to index
    %c0_95 = arith.constant 0 : index
    %c0_96 = arith.constant 0 : index
    %293 = vector.load %arg12[%292, %c0_95, %c0_96] : memref<8x8x128xf32, #tpu.memory_space<vmem>>, vector<1x8x128xf32>
    %294 = vector.shape_cast %293 : vector<1x8x128xf32> to vector<8x128xf32>
    %295 = arith.truncf %291 : vector<8x32xf32> to vector<8x32xbf16>
    %cst_97 = arith.constant dense<0.000000e+00> : vector<8x128xf32>
    %296 = tpu.matmul %295, %237, %cst_97 {dimension_numbers = #tpu.dot_dimension_numbers<[1], [0], [0], [1], [0, 0, 1, 1], [], []>} : vector<8x32xbf16>, vector<32x128xbf16>, vector<8x128xf32> -> vector<8x128xf32>
    %297 = arith.addf %294, %296 : vector<8x128xf32>
    %298 = vector.extract_strided_slice %297 {offsets = [0, 0], sizes = [8, 96], strides = [1, 1]} : vector<8x128xf32> to vector<8x96xf32>
    %299 = arith.negf %298 : vector<8x96xf32>
    %300 = math.exp %299 : vector<8x96xf32>
    %cst_98 = arith.constant 1.000000e+00 : f32
    %301 = vector.broadcast %cst_98 : f32 to vector<8x96xf32>
    %302 = arith.addf %301, %300 : vector<8x96xf32>
    %303 = arith.divf %301, %302 : vector<8x96xf32>
    %304 = vector.extract_strided_slice %303 {offsets = [0, 0], sizes = [8, 32], strides = [1, 1]} : vector<8x96xf32> to vector<8x32xf32>
    %305 = vector.extract_strided_slice %303 {offsets = [0, 32], sizes = [8, 32], strides = [1, 1]} : vector<8x96xf32> to vector<8x32xf32>
    %306 = vector.extract_strided_slice %303 {offsets = [0, 64], sizes = [8, 32], strides = [1, 1]} : vector<8x96xf32> to vector<8x32xf32>
    %307 = vector.extract_strided_slice %297 {offsets = [0, 96], sizes = [8, 32], strides = [1, 1]} : vector<8x128xf32> to vector<8x32xf32>
    %308 = math.tanh %307 : vector<8x32xf32>
    %309 = arith.mulf %305, %289 : vector<8x32xf32>
    %310 = arith.mulf %304, %308 : vector<8x32xf32>
    %311 = arith.addf %309, %310 : vector<8x32xf32>
    %312 = math.tanh %311 : vector<8x32xf32>
    %313 = arith.mulf %306, %312 : vector<8x32xf32>
    %c3_i32_99 = arith.constant 3 : i32
    %314 = arith.index_cast %c3_i32_99 : i32 to index
    %c0_100 = arith.constant 0 : index
    %c0_101 = arith.constant 0 : index
    %315 = vector.load %arg12[%314, %c0_100, %c0_101] : memref<8x8x128xf32, #tpu.memory_space<vmem>>, vector<1x8x128xf32>
    %316 = vector.shape_cast %315 : vector<1x8x128xf32> to vector<8x128xf32>
    %317 = arith.truncf %313 : vector<8x32xf32> to vector<8x32xbf16>
    %cst_102 = arith.constant dense<0.000000e+00> : vector<8x128xf32>
    %318 = tpu.matmul %317, %237, %cst_102 {dimension_numbers = #tpu.dot_dimension_numbers<[1], [0], [0], [1], [0, 0, 1, 1], [], []>} : vector<8x32xbf16>, vector<32x128xbf16>, vector<8x128xf32> -> vector<8x128xf32>
    %319 = arith.addf %316, %318 : vector<8x128xf32>
    %320 = vector.extract_strided_slice %319 {offsets = [0, 0], sizes = [8, 96], strides = [1, 1]} : vector<8x128xf32> to vector<8x96xf32>
    %321 = arith.negf %320 : vector<8x96xf32>
    %322 = math.exp %321 : vector<8x96xf32>
    %cst_103 = arith.constant 1.000000e+00 : f32
    %323 = vector.broadcast %cst_103 : f32 to vector<8x96xf32>
    %324 = arith.addf %323, %322 : vector<8x96xf32>
    %325 = arith.divf %323, %324 : vector<8x96xf32>
    %326 = vector.extract_strided_slice %325 {offsets = [0, 0], sizes = [8, 32], strides = [1, 1]} : vector<8x96xf32> to vector<8x32xf32>
    %327 = vector.extract_strided_slice %325 {offsets = [0, 32], sizes = [8, 32], strides = [1, 1]} : vector<8x96xf32> to vector<8x32xf32>
    %328 = vector.extract_strided_slice %325 {offsets = [0, 64], sizes = [8, 32], strides = [1, 1]} : vector<8x96xf32> to vector<8x32xf32>
    %329 = vector.extract_strided_slice %319 {offsets = [0, 96], sizes = [8, 32], strides = [1, 1]} : vector<8x128xf32> to vector<8x32xf32>
    %330 = math.tanh %329 : vector<8x32xf32>
    %331 = arith.mulf %327, %311 : vector<8x32xf32>
    %332 = arith.mulf %326, %330 : vector<8x32xf32>
    %333 = arith.addf %331, %332 : vector<8x32xf32>
    %334 = math.tanh %333 : vector<8x32xf32>
    %335 = arith.mulf %328, %334 : vector<8x32xf32>
    %c4_i32_104 = arith.constant 4 : i32
    %336 = arith.index_cast %c4_i32_104 : i32 to index
    %c0_105 = arith.constant 0 : index
    %c0_106 = arith.constant 0 : index
    %337 = vector.load %arg12[%336, %c0_105, %c0_106] : memref<8x8x128xf32, #tpu.memory_space<vmem>>, vector<1x8x128xf32>
    %338 = vector.shape_cast %337 : vector<1x8x128xf32> to vector<8x128xf32>
    %339 = arith.truncf %335 : vector<8x32xf32> to vector<8x32xbf16>
    %cst_107 = arith.constant dense<0.000000e+00> : vector<8x128xf32>
    %340 = tpu.matmul %339, %237, %cst_107 {dimension_numbers = #tpu.dot_dimension_numbers<[1], [0], [0], [1], [0, 0, 1, 1], [], []>} : vector<8x32xbf16>, vector<32x128xbf16>, vector<8x128xf32> -> vector<8x128xf32>
    %341 = arith.addf %338, %340 : vector<8x128xf32>
    %342 = vector.extract_strided_slice %341 {offsets = [0, 0], sizes = [8, 96], strides = [1, 1]} : vector<8x128xf32> to vector<8x96xf32>
    %343 = arith.negf %342 : vector<8x96xf32>
    %344 = math.exp %343 : vector<8x96xf32>
    %cst_108 = arith.constant 1.000000e+00 : f32
    %345 = vector.broadcast %cst_108 : f32 to vector<8x96xf32>
    %346 = arith.addf %345, %344 : vector<8x96xf32>
    %347 = arith.divf %345, %346 : vector<8x96xf32>
    %348 = vector.extract_strided_slice %347 {offsets = [0, 0], sizes = [8, 32], strides = [1, 1]} : vector<8x96xf32> to vector<8x32xf32>
    %349 = vector.extract_strided_slice %347 {offsets = [0, 32], sizes = [8, 32], strides = [1, 1]} : vector<8x96xf32> to vector<8x32xf32>
    %350 = vector.extract_strided_slice %347 {offsets = [0, 64], sizes = [8, 32], strides = [1, 1]} : vector<8x96xf32> to vector<8x32xf32>
    %351 = vector.extract_strided_slice %341 {offsets = [0, 96], sizes = [8, 32], strides = [1, 1]} : vector<8x128xf32> to vector<8x32xf32>
    %352 = math.tanh %351 : vector<8x32xf32>
    %353 = arith.mulf %349, %333 : vector<8x32xf32>
    %354 = arith.mulf %348, %352 : vector<8x32xf32>
    %355 = arith.addf %353, %354 : vector<8x32xf32>
    %356 = math.tanh %355 : vector<8x32xf32>
    %357 = arith.mulf %350, %356 : vector<8x32xf32>
    %c5_i32_109 = arith.constant 5 : i32
    %358 = arith.index_cast %c5_i32_109 : i32 to index
    %c0_110 = arith.constant 0 : index
    %c0_111 = arith.constant 0 : index
    %359 = vector.load %arg12[%358, %c0_110, %c0_111] : memref<8x8x128xf32, #tpu.memory_space<vmem>>, vector<1x8x128xf32>
    %360 = vector.shape_cast %359 : vector<1x8x128xf32> to vector<8x128xf32>
    %361 = arith.truncf %357 : vector<8x32xf32> to vector<8x32xbf16>
    %cst_112 = arith.constant dense<0.000000e+00> : vector<8x128xf32>
    %362 = tpu.matmul %361, %237, %cst_112 {dimension_numbers = #tpu.dot_dimension_numbers<[1], [0], [0], [1], [0, 0, 1, 1], [], []>} : vector<8x32xbf16>, vector<32x128xbf16>, vector<8x128xf32> -> vector<8x128xf32>
    %363 = arith.addf %360, %362 : vector<8x128xf32>
    %364 = vector.extract_strided_slice %363 {offsets = [0, 0], sizes = [8, 96], strides = [1, 1]} : vector<8x128xf32> to vector<8x96xf32>
    %365 = arith.negf %364 : vector<8x96xf32>
    %366 = math.exp %365 : vector<8x96xf32>
    %cst_113 = arith.constant 1.000000e+00 : f32
    %367 = vector.broadcast %cst_113 : f32 to vector<8x96xf32>
    %368 = arith.addf %367, %366 : vector<8x96xf32>
    %369 = arith.divf %367, %368 : vector<8x96xf32>
    %370 = vector.extract_strided_slice %369 {offsets = [0, 0], sizes = [8, 32], strides = [1, 1]} : vector<8x96xf32> to vector<8x32xf32>
    %371 = vector.extract_strided_slice %369 {offsets = [0, 32], sizes = [8, 32], strides = [1, 1]} : vector<8x96xf32> to vector<8x32xf32>
    %372 = vector.extract_strided_slice %369 {offsets = [0, 64], sizes = [8, 32], strides = [1, 1]} : vector<8x96xf32> to vector<8x32xf32>
    %373 = vector.extract_strided_slice %363 {offsets = [0, 96], sizes = [8, 32], strides = [1, 1]} : vector<8x128xf32> to vector<8x32xf32>
    %374 = math.tanh %373 : vector<8x32xf32>
    %375 = arith.mulf %371, %355 : vector<8x32xf32>
    %376 = arith.mulf %370, %374 : vector<8x32xf32>
    %377 = arith.addf %375, %376 : vector<8x32xf32>
    %378 = math.tanh %377 : vector<8x32xf32>
    %379 = arith.mulf %372, %378 : vector<8x32xf32>
    %c6_i32_114 = arith.constant 6 : i32
    %380 = arith.index_cast %c6_i32_114 : i32 to index
    %c0_115 = arith.constant 0 : index
    %c0_116 = arith.constant 0 : index
    %381 = vector.load %arg12[%380, %c0_115, %c0_116] : memref<8x8x128xf32, #tpu.memory_space<vmem>>, vector<1x8x128xf32>
    %382 = vector.shape_cast %381 : vector<1x8x128xf32> to vector<8x128xf32>
    %383 = arith.truncf %379 : vector<8x32xf32> to vector<8x32xbf16>
    %cst_117 = arith.constant dense<0.000000e+00> : vector<8x128xf32>
    %384 = tpu.matmul %383, %237, %cst_117 {dimension_numbers = #tpu.dot_dimension_numbers<[1], [0], [0], [1], [0, 0, 1, 1], [], []>} : vector<8x32xbf16>, vector<32x128xbf16>, vector<8x128xf32> -> vector<8x128xf32>
    %385 = arith.addf %382, %384 : vector<8x128xf32>
    %386 = vector.extract_strided_slice %385 {offsets = [0, 0], sizes = [8, 96], strides = [1, 1]} : vector<8x128xf32> to vector<8x96xf32>
    %387 = arith.negf %386 : vector<8x96xf32>
    %388 = math.exp %387 : vector<8x96xf32>
    %cst_118 = arith.constant 1.000000e+00 : f32
    %389 = vector.broadcast %cst_118 : f32 to vector<8x96xf32>
    %390 = arith.addf %389, %388 : vector<8x96xf32>
    %391 = arith.divf %389, %390 : vector<8x96xf32>
    %392 = vector.extract_strided_slice %391 {offsets = [0, 0], sizes = [8, 32], strides = [1, 1]} : vector<8x96xf32> to vector<8x32xf32>
    %393 = vector.extract_strided_slice %391 {offsets = [0, 32], sizes = [8, 32], strides = [1, 1]} : vector<8x96xf32> to vector<8x32xf32>
    %394 = vector.extract_strided_slice %391 {offsets = [0, 64], sizes = [8, 32], strides = [1, 1]} : vector<8x96xf32> to vector<8x32xf32>
    %395 = vector.extract_strided_slice %385 {offsets = [0, 96], sizes = [8, 32], strides = [1, 1]} : vector<8x128xf32> to vector<8x32xf32>
    %396 = math.tanh %395 : vector<8x32xf32>
    %397 = arith.mulf %393, %377 : vector<8x32xf32>
    %398 = arith.mulf %392, %396 : vector<8x32xf32>
    %399 = arith.addf %397, %398 : vector<8x32xf32>
    %400 = math.tanh %399 : vector<8x32xf32>
    %401 = arith.mulf %394, %400 : vector<8x32xf32>
    %c7_i32_119 = arith.constant 7 : i32
    %402 = arith.index_cast %c7_i32_119 : i32 to index
    %c0_120 = arith.constant 0 : index
    %c0_121 = arith.constant 0 : index
    %403 = vector.load %arg12[%402, %c0_120, %c0_121] : memref<8x8x128xf32, #tpu.memory_space<vmem>>, vector<1x8x128xf32>
    %404 = vector.shape_cast %403 : vector<1x8x128xf32> to vector<8x128xf32>
    %405 = arith.truncf %401 : vector<8x32xf32> to vector<8x32xbf16>
    %cst_122 = arith.constant dense<0.000000e+00> : vector<8x128xf32>
    %406 = tpu.matmul %405, %237, %cst_122 {dimension_numbers = #tpu.dot_dimension_numbers<[1], [0], [0], [1], [0, 0, 1, 1], [], []>} : vector<8x32xbf16>, vector<32x128xbf16>, vector<8x128xf32> -> vector<8x128xf32>
    %407 = arith.addf %404, %406 : vector<8x128xf32>
    %408 = vector.extract_strided_slice %407 {offsets = [0, 0], sizes = [8, 96], strides = [1, 1]} : vector<8x128xf32> to vector<8x96xf32>
    %409 = arith.negf %408 : vector<8x96xf32>
    %410 = math.exp %409 : vector<8x96xf32>
    %cst_123 = arith.constant 1.000000e+00 : f32
    %411 = vector.broadcast %cst_123 : f32 to vector<8x96xf32>
    %412 = arith.addf %411, %410 : vector<8x96xf32>
    %413 = arith.divf %411, %412 : vector<8x96xf32>
    %414 = vector.extract_strided_slice %413 {offsets = [0, 0], sizes = [8, 32], strides = [1, 1]} : vector<8x96xf32> to vector<8x32xf32>
    %415 = vector.extract_strided_slice %413 {offsets = [0, 32], sizes = [8, 32], strides = [1, 1]} : vector<8x96xf32> to vector<8x32xf32>
    %416 = vector.extract_strided_slice %413 {offsets = [0, 64], sizes = [8, 32], strides = [1, 1]} : vector<8x96xf32> to vector<8x32xf32>
    %417 = vector.extract_strided_slice %407 {offsets = [0, 96], sizes = [8, 32], strides = [1, 1]} : vector<8x128xf32> to vector<8x32xf32>
    %418 = math.tanh %417 : vector<8x32xf32>
    %419 = arith.mulf %415, %399 : vector<8x32xf32>
    %420 = arith.mulf %414, %418 : vector<8x32xf32>
    %421 = arith.addf %419, %420 : vector<8x32xf32>
    %422 = math.tanh %421 : vector<8x32xf32>
    %423 = arith.mulf %416, %422 : vector<8x32xf32>
    %c8_i32_124 = arith.constant 8 : i32
    %424 = arith.truncf %423 : vector<8x32xf32> to vector<8x32xbf16>
    %c0_125 = arith.constant 0 : index
    %c0_126 = arith.constant 0 : index
    %425 = vector.load %arg8[%c0_125, %c0_126] : memref<32x10xbf16, #tpu.memory_space<vmem>>, vector<32x10xbf16>
    %cst_127 = arith.constant dense<0.000000e+00> : vector<8x10xf32>
    %426 = tpu.matmul %424, %425, %cst_127 {dimension_numbers = #tpu.dot_dimension_numbers<[1], [0], [0], [1], [0, 0, 1, 1], [], []>} : vector<8x32xbf16>, vector<32x10xbf16>, vector<8x10xf32> -> vector<8x10xf32>
    %c0_128 = arith.constant 0 : index
    %c0_129 = arith.constant 0 : index
    %427 = vector.load %arg9[%c0_128, %c0_129] : memref<1x10xf32, #tpu.memory_space<vmem>>, vector<1x10xf32>
    %428 = vector.broadcast %427 : vector<1x10xf32> to vector<8x10xf32>
    %429 = arith.addf %426, %428 : vector<8x10xf32>
    %c0_130 = arith.constant 0 : index
    %c0_131 = arith.constant 0 : index
    %430 = vector.load %arg10[%c0_130, %c0_131] : memref<8x10xf32, #tpu.memory_space<vmem>>, vector<8x10xf32>
    tpu.vector_store %arg10[%c0_130, %c0_131], %429 {strides = array<i32>} : memref<8x10xf32, #tpu.memory_space<vmem>>, vector<8x10xf32>,
    return
  }
  func.func @transform_0(%arg0: i32) -> (i32, i32, i32) {
    %c0_i32 = arith.constant 0 : i32
    %c0_i32_0 = arith.constant 0 : i32
    %c0_i32_1 = arith.constant 0 : i32
    return %c0_i32, %arg0, %c0_i32_0 : i32, i32, i32
  }
  func.func @transform_1(%arg0: i32) -> (i32, i32) {
    %c0_i32 = arith.constant 0 : i32
    %c0_i32_0 = arith.constant 0 : i32
    %c0_i32_1 = arith.constant 0 : i32
    return %c0_i32, %c0_i32_0 : i32, i32
  }
  func.func @transform_2(%arg0: i32) -> (i32, i32) {
    %c0_i32 = arith.constant 0 : i32
    %c0_i32_0 = arith.constant 0 : i32
    %c0_i32_1 = arith.constant 0 : i32
    return %c0_i32, %c0_i32_0 : i32, i32
  }
  func.func @transform_3(%arg0: i32) -> (i32, i32) {
    %c0_i32 = arith.constant 0 : i32
    %c0_i32_0 = arith.constant 0 : i32
    %c0_i32_1 = arith.constant 0 : i32
    return %c0_i32, %c0_i32_0 : i32, i32
  }
  func.func @transform_4(%arg0: i32) -> (i32, i32) {
    %c0_i32 = arith.constant 0 : i32
    %c0_i32_0 = arith.constant 0 : i32
    %c0_i32_1 = arith.constant 0 : i32
    return %c0_i32, %c0_i32_0 : i32, i32
  }
  func.func @transform_5(%arg0: i32) -> (i32, i32) {
    %c0_i32 = arith.constant 0 : i32
    %c0_i32_0 = arith.constant 0 : i32
    %c0_i32_1 = arith.constant 0 : i32
    return %c0_i32, %c0_i32_0 : i32, i32
  }
  func.func @transform_6(%arg0: i32) -> (i32, i32) {
    %c0_i32 = arith.constant 0 : i32
    %c0_i32_0 = arith.constant 0 : i32
    %c0_i32_1 = arith.constant 0 : i32
    return %c0_i32, %c0_i32_0 : i32, i32
  }
  func.func @transform_7(%arg0: i32) -> (i32, i32) {
    %c0_i32 = arith.constant 0 : i32
    %c0_i32_0 = arith.constant 0 : i32
    %c0_i32_1 = arith.constant 0 : i32
    return %c0_i32, %c0_i32_0 : i32, i32
  }
  func.func @transform_8(%arg0: i32) -> (i32, i32) {
    %c0_i32 = arith.constant 0 : i32
    %c0_i32_0 = arith.constant 0 : i32
    %c0_i32_1 = arith.constant 0 : i32
    return %c0_i32, %c0_i32_0 : i32, i32
  }
  func.func @transform_9(%arg0: i32) -> (i32, i32) {
    %c0_i32 = arith.constant 0 : i32
    %c0_i32_0 = arith.constant 0 : i32
    return %arg0, %c0_i32 : i32, i32
  }
}

</mosaic_0001>

<llo_original>
// kernel: robustlog_forward.1
$region0: #{robustlog_forward.1}
  #allocation0 [shape = 'u32[]', space=smem, size = 0x4, offset = 0x4, fixed_abs, tag = 'smem constant byte address 0x4 - core index']
  #allocation1 [shape = 'u32[144,128]{1,0:T(1,128)}', space=vmem, size = 0x12000, scoped, tag = 'internal scratch']
  #allocation2 [shape = 'bf16[8,8,32]{2,1,0:T(8,128)(2,1)}', space=vmem, size = 0x4000, scoped, tag = 'scratch operand']
  #allocation3 [shape = 'f32[8,8,128]{2,1,0:T(8,128)}', space=vmem, size = 0x8000, scoped, tag = 'scratch operand']
  %s0 = inlined_call_operand.vmem [shape: bf16[8,8,16], index: 0, kind: input, shape index: {}]
  %s1 = inlined_call_operand.vmem [shape: bf16[16,128], index: 1, kind: input, shape index: {}]
  %s2 = inlined_call_operand.vmem [shape: bf16[32,128], index: 2, kind: input, shape index: {}]
  %s3 = inlined_call_operand.vmem [shape: f32[1,128], index: 3, kind: input, shape index: {}]
  %s4 = inlined_call_operand.vmem [shape: bf16[32,128], index: 4, kind: input, shape index: {}]
  %s5 = inlined_call_operand.vmem [shape: bf16[32,128], index: 5, kind: input, shape index: {}]
  %s6 = inlined_call_operand.vmem [shape: f32[1,128], index: 6, kind: input, shape index: {}]
  %s7 = inlined_call_operand.vmem [shape: bf16[32,10], index: 7, kind: input, shape index: {}]
  %s8 = inlined_call_operand.vmem [shape: f32[1,10], index: 8, kind: input, shape index: {}]
  %s9 = inlined_call_operand.vmem [shape: f32[8,10], index: 9, kind: output, shape index: {}]
  %s10 = sld [smem:[#allocation0]]
  $region46: #{robustlog_forward.1} parent=0
    _
  %s12 = ssub.s32 1, %s10
  %s13 = scalar_select 0, %s12, %s10
  // Predicated region
  $region2: #{robustlog_forward.1} parent=0 // pred_check
    _
  $region3: #{robustlog_forward.1} parent=0 // pred_check_branch
    %15 = sbr.rel (0) target = $region5
  $region4: #{robustlog_forward.1} parent=0 // pred_region
    _
  $region5: #{robustlog_forward.1} parent=0 // pred_fallthru
    _
  // Predicated region
  $region6: #{robustlog_forward.1} parent=0 // pred_check
    _
  $region7: #{robustlog_forward.1} parent=0 // pred_check_branch
    %17 = sbr.rel (0) target = $region9
  $region8: #{robustlog_forward.1} parent=0 // pred_region
    _
  $region9: #{robustlog_forward.1} parent=0 // pred_fallthru
    _
  // Predicated region
  $region10: #{robustlog_forward.1} parent=0 // pred_check
    _
  $region11: #{robustlog_forward.1} parent=0 // pred_check_branch
    %19 = sbr.rel (0) target = $region13
  $region12: #{robustlog_forward.1} parent=0 // pred_region
    _
  $region13: #{robustlog_forward.1} parent=0 // pred_fallthru
    _
  // Predicated region
  $region14: #{robustlog_forward.1} parent=0 // pred_check
    _
  $region15: #{robustlog_forward.1} parent=0 // pred_check_branch
    %21 = sbr.rel (0) target = $region17
  $region16: #{robustlog_forward.1} parent=0 // pred_region
    _
  $region17: #{robustlog_forward.1} parent=0 // pred_fallthru
    _
  // Predicated region
  $region18: #{robustlog_forward.1} parent=0 // pred_check
    _
  $region19: #{robustlog_forward.1} parent=0 // pred_check_branch
    %23 = sbr.rel (0) target = $region21
  $region20: #{robustlog_forward.1} parent=0 // pred_region
    _
  $region21: #{robustlog_forward.1} parent=0 // pred_fallthru
    _
  // Predicated region
  $region22: #{robustlog_forward.1} parent=0 // pred_check
    _
  $region23: #{robustlog_forward.1} parent=0 // pred_check_branch
    %25 = sbr.rel (0) target = $region25
  $region24: #{robustlog_forward.1} parent=0 // pred_region
    _
  $region25: #{robustlog_forward.1} parent=0 // pred_fallthru
    _
  // Predicated region
  $region26: #{robustlog_forward.1} parent=0 // pred_check
    _
  $region27: #{robustlog_forward.1} parent=0 // pred_check_branch
    %27 = sbr.rel (0) target = $region29
  $region28: #{robustlog_forward.1} parent=0 // pred_region
    _
  $region29: #{robustlog_forward.1} parent=0 // pred_fallthru
    _
  // Predicated region
  $region30: #{robustlog_forward.1} parent=0 // pred_check
    _
  $region31: #{robustlog_forward.1} parent=0 // pred_check_branch
    %29 = sbr.rel (0) target = $region33
  $region32: #{robustlog_forward.1} parent=0 // pred_region
    _
  $region33: #{robustlog_forward.1} parent=0 // pred_fallthru
    _
  // Predicated region
  $region34: #{robustlog_forward.1} parent=0 // pred_check
    _
  $region35: #{robustlog_forward.1} parent=0 // pred_check_branch
    %31 = sbr.rel (0) target = $region37
  $region36: #{robustlog_forward.1} parent=0 // pred_region
    _
  $region37: #{robustlog_forward.1} parent=0 // pred_fallthru
    _
  %v33 = vld [vmem:[%s1] sm:$0xf]
  %v34 = vld [vmem:[%s1 + $0x4] sm:$0xf]
  %v35 = vld [vmem:[%s2] sm:$0xf]
  %v36 = vld [vmem:[%s2 + $0x4] sm:$0xf]
  %v37 = vld [vmem:[%s2 + $0x8] sm:$0xf]
  %v38 = vld [vmem:[%s2 + $0xc] sm:$0xf]
  %v39 = vld [vmem:[%s3] sm:$0x1]
  %v40 = vld [vmem:[%s0] sm:$0xf]
  %v41 = vld [vmem:[%s0 + $0x4] sm:$0xf]
  %v42 = vld [vmem:[%s0 + $0x8] sm:$0xf]
  %v43 = vld [vmem:[%s0 + $0xc] sm:$0xf]
  %v44 = vld [vmem:[%s0 + $0x10] sm:$0xf]
  %v45 = vld [vmem:[%s0 + $0x14] sm:$0xf]
  %v46 = vld [vmem:[%s0 + $0x18] sm:$0xf]
  %v47 = vld [vmem:[%s0 + $0x1c] sm:$0xf]
  %v49 = vlaneseq
  %v50 = vshrl.u32 %v49, 7
  %v51 = vsub.s32 0, %v50
  %v52 = vrot.slane %v39, %v51
  %v62 = vunpack.c.l.b16 %v40
  %v63 = vunpack.c.l.b16 %v41
  %v64 = vunpack.c.l.b16 %v42
  %v65 = vunpack.c.l.b16 %v43
  %v66 = vunpack.c.l.b16 %v44
  %v67 = vunpack.c.l.b16 %v45
  %v68 = vunpack.c.l.b16 %v46
  %v69 = vunpack.c.l.b16 %v47
  %v70 = vpack.c.b16 %v63, %v62
  %v71 = vpack.c.b16 %v65, %v64
  %v72 = vpack.c.b16 %v67, %v66
  %v73 = vpack.c.b16 %v69, %v68
  %v76 = vunpack.c.l.b16 %v33
  %v77 = vunpack.c.l.b16 %v34
  %v78 = vpack.c.b16 %v77, %v76
  %vm80 = vcmask 130048
  %v82 = vsel %vm80, %v70, 0
  %v85 = vsel %vm80, %v71, 0
  %v88 = vsel %vm80, %v72, 0
  %v91 = vsel %vm80, %v73, 0
  %93 = vmatprep.subr.bf16.mxu0 0
  %94 = vmatpush1.bf16.msra.mxu0 %v78
  %95 = vmatprep.subr.bf16.mxu0 0
  %96 = vmatpush1.bf16.msra.mxu0 0
  %97 = vmatprep.subr.bf16.mxu0 0
  %98 = vmatpush1.bf16.msra.mxu0 0
  %99 = vmatprep.subr.bf16.mxu0 0
  %100 = vmatpush1.bf16.msra.mxu0 0
  %101 = vmatprep.subr.bf16.mxu0 0
  %102 = vmatpush1.bf16.msra.mxu0 0
  %103 = vmatprep.subr.bf16.mxu0 0
  %104 = vmatpush1.bf16.msra.mxu0 0
  %105 = vmatprep.subr.bf16.mxu0 0
  %106 = vmatpush1.bf16.msra.mxu0 0
  %107 = vmatprep.subr.bf16.mxu0 0
  %108 = vmatpush1.bf16.msra.mxu0 0
  %109 = vmatprep.subr.bf16.mxu0 0
  %110 = vmatpush1.bf16.msra.mxu0 0
  %111 = vmatprep.subr.bf16.mxu0 0
  %112 = vmatpush1.bf16.msra.mxu0 0
  %113 = vmatprep.subr.bf16.mxu0 0
  %114 = vmatpush1.bf16.msra.mxu0 0
  %115 = vmatprep.subr.bf16.mxu0 0
  %116 = vmatpush1.bf16.msra.mxu0 0
  %117 = vmatprep.subr.bf16.mxu0 0
  %118 = vmatpush1.bf16.msra.mxu0 0
  %119 = vmatprep.subr.bf16.mxu0 0
  %120 = vmatpush1.bf16.msra.mxu0 0
  %121 = vmatprep.subr.bf16.mxu0 0
  %122 = vmatpush1.bf16.msra.mxu0 0
  %123 = vmatprep.subr.bf16.mxu0 0
  %124 = vmatpush1.bf16.msra.mxu0 0
  %125 = vmatprep.mubr.bf16.mxu0 0
  %126 = vmatmul.mubr.bf16.gmra.mrb[0].mxu0 %v82
  %v127 = vpop.f32.mrb[0].mxu0
  %v128 = vadd.f32 %v52, %v127
  %v129 = vpop.f32.mrb[0].mxu0
  %v130 = vpop.f32.mrb[0].mxu0
  %v131 = vadd.f32 %v52, %v130
  %v132 = vpop.f32.mrb[0].mxu0
  %133 = vmatprep.mubr.bf16.mxu0 0
  %134 = vmatmul.mubr.bf16.gmra.mrb[0].mxu0 %v85
  %v135 = vpop.f32.mrb[0].mxu0
  %v136 = vadd.f32 %v52, %v135
  %v137 = vpop.f32.mrb[0].mxu0
  %v138 = vpop.f32.mrb[0].mxu0
  %v139 = vadd.f32 %v52, %v138
  %v140 = vpop.f32.mrb[0].mxu0
  %141 = vmatprep.mubr.bf16.mxu0 0
  %142 = vmatmul.mubr.bf16.gmra.mrb[0].mxu0 %v88
  %v143 = vpop.f32.mrb[0].mxu0
  %v144 = vadd.f32 %v52, %v143
  %v145 = vpop.f32.mrb[0].mxu0
  %v146 = vpop.f32.mrb[0].mxu0
  %v147 = vadd.f32 %v52, %v146
  %v148 = vpop.f32.mrb[0].mxu0
  %149 = vmatprep.mubr.bf16.mxu0 0
  %150 = vmatmul.mubr.bf16.gmra.mrb[0].mxu0 %v91
  %v151 = vpop.f32.mrb[0].mxu0
  %v152 = vadd.f32 %v52, %v151
  %v153 = vpop.f32.mrb[0].mxu0
  %v154 = vpop.f32.mrb[0].mxu0
  %v155 = vadd.f32 %v52, %v154
  %v156 = vpop.f32.mrb[0].mxu0
  %157 = vdwg.mxu0
  %158 = vst [vmem:[#allocation3] sm:$0xff] %v128
  %159 = vst [vmem:[#allocation3 + $0x8] sm:$0xff] %v131
  %160 = vst [vmem:[#allocation3 + $0x10] sm:$0xff] %v136
  %161 = vst [vmem:[#allocation3 + $0x18] sm:$0xff] %v139
  %162 = vst [vmem:[#allocation3 + $0x20] sm:$0xff] %v144
  %163 = vst [vmem:[#allocation3 + $0x28] sm:$0xff] %v147
  %164 = vst [vmem:[#allocation3 + $0x30] sm:$0xff] %v152
  %165 = vst [vmem:[#allocation3 + $0x38] sm:$0xff] %v155
  %v166 = vld [vmem:[#allocation3] sm:$0xff]
  %v171 = vunpack.c.l.b16 %v35
  %v172 = vunpack.c.l.b16 %v36
  %v173 = vunpack.c.l.b16 %v37
  %v174 = vunpack.c.l.b16 %v38
  %v175 = vpack.c.b16 %v172, %v171
  %v176 = vpack.c.b16 %v174, %v173
  %vm179 = vcmask 261120
  %v181 = vsel %vm179, 0, 0
  %183 = vmatprep.subr.bf16.mxu0 0
  %184 = vmatpush1.bf16.msra.mxu0 %v175
  %185 = vmatprep.subr.bf16.mxu0 0
  %186 = vmatpush1.bf16.msra.mxu0 %v176
  %187 = vmatprep.subr.bf16.mxu0 0
  %188 = vmatpush1.bf16.msra.mxu0 0
  %189 = vmatprep.subr.bf16.mxu0 0
  %190 = vmatpush1.bf16.msra.mxu0 0
  %191 = vmatprep.subr.bf16.mxu0 0
  %192 = vmatpush1.bf16.msra.mxu0 0
  %193 = vmatprep.subr.bf16.mxu0 0
  %194 = vmatpush1.bf16.msra.mxu0 0
  %195 = vmatprep.subr.bf16.mxu0 0
  %196 = vmatpush1.bf16.msra.mxu0 0
  %197 = vmatprep.subr.bf16.mxu0 0
  %198 = vmatpush1.bf16.msra.mxu0 0
  %199 = vmatprep.subr.bf16.mxu0 0
  %200 = vmatpush1.bf16.msra.mxu0 0
  %201 = vmatprep.subr.bf16.mxu0 0
  %202 = vmatpush1.bf16.msra.mxu0 0
  %203 = vmatprep.subr.bf16.mxu0 0
  %204 = vmatpush1.bf16.msra.mxu0 0
  %205 = vmatprep.subr.bf16.mxu0 0
  %206 = vmatpush1.bf16.msra.mxu0 0
  %207 = vmatprep.subr.bf16.mxu0 0
  %208 = vmatpush1.bf16.msra.mxu0 0
  %209 = vmatprep.subr.bf16.mxu0 0
  %210 = vmatpush1.bf16.msra.mxu0 0
  %211 = vmatprep.subr.bf16.mxu0 0
  %212 = vmatpush1.bf16.msra.mxu0 0
  %213 = vmatprep.subr.bf16.mxu0 0
  %214 = vmatpush1.bf16.msra.mxu0 0
  %215 = vmatprep.mubr.bf16.mxu0 0
  %216 = vmatmul.mubr.bf16.gmra.mrb[0].mxu0 %v181
  %v217 = vpop.f32.mrb[0].mxu0
  %v218 = vadd.f32 0.0, %v217
  %v219 = vpop.f32.mrb[0].mxu0
  %v220 = vpop.f32.mrb[0].mxu0
  %v221 = vpop.f32.mrb[0].mxu0
  %222 = vdwg.mxu0
  %v223 = vadd.f32 %v166, %v218
  %v224 = vxor.u32 %v223, 2147483648
  %v225 = vmul.f32 %v224, 1.442695
  %v226 = vpow.pop %v225
  %v227 = vadd.f32 %v226, 1.0
  %v228 = vrcp.pop %v227
  %v229 = vmul.f32 1.0, %v228
  %v230 = vtanh.pop %v223
  %v231 = vmul.f32 %v229, 0.0
  %233 = vrot.lane.b32.xlu0 %v230, 32
  %v234 = vpop.permute.xlu0 %233
  %v236 = vmul.f32 %v229, %v234
  %238 = vrot.lane.b32.xlu0 %v236, 32
  %v239 = vpop.permute.xlu0 %238
  %v241 = vadd.f32 %v231, %v239
  %v242 = vtanh.pop %v241
  %244 = vrot.lane.b32.xlu0 %v242, 32
  %v245 = vpop.permute.xlu0 %244
  %v247 = vmul.f32 %v229, %v245
  %v248 = vpack.c.bf16 %v247, %v247
  %v250 = vunpack.c.l.b16 %v248
  %v251 = vpack.c.b16 %v250, %v250
  %252 = vrot.lane.b32.xlu0 %v251, 64
  %v253 = vpop.permute.xlu0 %252
  %vm255 = vcmask 257024
  %256 = vst.msk [vmem:[#allocation2] sm:$0xf] %vm255, %v253
  %s257 = scalar_lea.vmem [#allocation3], 8
  %v258 = vld [vmem:[%s257] sm:$0xff]
  %259 = vrot.lane.b32.xlu0 %v248, 64
  %v260 = vpop.permute.xlu0 %259
  %v262 = vsel %vm179, %v260, 0
  %264 = vmatprep.subr.bf16.mxu0 0
  %265 = vmatpush1.bf16.msra.mxu0 %v175
  %266 = vmatprep.subr.bf16.mxu0 0
  %267 = vmatpush1.bf16.msra.mxu0 %v176
  %268 = vmatprep.subr.bf16.mxu0 0
  %269 = vmatpush1.bf16.msra.mxu0 0
  %270 = vmatprep.subr.bf16.mxu0 0
  %271 = vmatpush1.bf16.msra.mxu0 0
  %272 = vmatprep.subr.bf16.mxu0 0
  %273 = vmatpush1.bf16.msra.mxu0 0
  %274 = vmatprep.subr.bf16.mxu0 0
  %275 = vmatpush1.bf16.msra.mxu0 0
  %276 = vmatprep.subr.bf16.mxu0 0
  %277 = vmatpush1.bf16.msra.mxu0 0
  %278 = vmatprep.subr.bf16.mxu0 0
  %279 = vmatpush1.bf16.msra.mxu0 0
  %280 = vmatprep.subr.bf16.mxu0 0
  %281 = vmatpush1.bf16.msra.mxu0 0
  %282 = vmatprep.subr.bf16.mxu0 0
  %283 = vmatpush1.bf16.msra.mxu0 0
  %284 = vmatprep.subr.bf16.mxu0 0
  %285 = vmatpush1.bf16.msra.mxu0 0
  %286 = vmatprep.subr.bf16.mxu0 0
  %287 = vmatpush1.bf16.msra.mxu0 0
  %288 = vmatprep.subr.bf16.mxu0 0
  %289 = vmatpush1.bf16.msra.mxu0 0
  %290 = vmatprep.subr.bf16.mxu0 0
  %291 = vmatpush1.bf16.msra.mxu0 0
  %292 = vmatprep.subr.bf16.mxu0 0
  %293 = vmatpush1.bf16.msra.mxu0 0
  %294 = vmatprep.subr.bf16.mxu0 0
  %295 = vmatpush1.bf16.msra.mxu0 0
  %296 = vmatprep.mubr.bf16.mxu0 0
  %297 = vmatmul.mubr.bf16.gmra.mrb[0].mxu0 %v262
  %v298 = vpop.f32.mrb[0].mxu0
  %v299 = vadd.f32 0.0, %v298
  %v300 = vpop.f32.mrb[0].mxu0
  %v301 = vpop.f32.mrb[0].mxu0
  %v302 = vpop.f32.mrb[0].mxu0
  %303 = vdwg.mxu0
  %v304 = vadd.f32 %v258, %v299
  %v305 = vxor.u32 %v304, 2147483648
  %v306 = vmul.f32 %v305, 1.442695
  %v307 = vpow.pop %v306
  %v308 = vadd.f32 %v307, 1.0
  %v309 = vrcp.pop %v308
  %v310 = vmul.f32 1.0, %v309
  %v311 = vtanh.pop %v304
  %v312 = vmul.f32 %v310, %v241
  %314 = vrot.lane.b32.xlu0 %v311, 32
  %v315 = vpop.permute.xlu0 %314
  %v317 = vmul.f32 %v310, %v315
  %319 = vrot.lane.b32.xlu0 %v317, 32
  %v320 = vpop.permute.xlu0 %319
  %v322 = vadd.f32 %v312, %v320
  %v323 = vtanh.pop %v322
  %325 = vrot.lane.b32.xlu0 %v323, 32
  %v326 = vpop.permute.xlu0 %325
  %v328 = vmul.f32 %v310, %v326
  %v329 = vpack.c.bf16 %v328, %v328
  %v331 = vunpack.c.l.b16 %v329
  %v332 = vpack.c.b16 %v331, %v331
  %333 = vrot.lane.b32.xlu0 %v332, 64
  %v334 = vpop.permute.xlu0 %333
  %s336 = scalar_lea.vmem [#allocation2], 4
  %337 = vst.msk [vmem:[%s336] sm:$0xf] %vm255, %v334
  %s338 = scalar_lea.vmem [#allocation3], 16
  %v339 = vld [vmem:[%s338] sm:$0xff]
  %340 = vrot.lane.b32.xlu0 %v329, 64
  %v341 = vpop.permute.xlu0 %340
  %v343 = vsel %vm179, %v341, 0
  %345 = vmatprep.subr.bf16.mxu0 0
  %346 = vmatpush1.bf16.msra.mxu0 %v175
  %347 = vmatprep.subr.bf16.mxu0 0
  %348 = vmatpush1.bf16.msra.mxu0 %v176
  %349 = vmatprep.subr.bf16.mxu0 0
  %350 = vmatpush1.bf16.msra.mxu0 0
  %351 = vmatprep.subr.bf16.mxu0 0
  %352 = vmatpush1.bf16.msra.mxu0 0
  %353 = vmatprep.subr.bf16.mxu0 0
  %354 = vmatpush1.bf16.msra.mxu0 0
  %355 = vmatprep.subr.bf16.mxu0 0
  %356 = vmatpush1.bf16.msra.mxu0 0
  %357 = vmatprep.subr.bf16.mxu0 0
  %358 = vmatpush1.bf16.msra.mxu0 0
  %359 = vmatprep.subr.bf16.mxu0 0
  %360 = vmatpush1.bf16.msra.mxu0 0
  %361 = vmatprep.subr.bf16.mxu0 0
  %362 = vmatpush1.bf16.msra.mxu0 0
  %363 = vmatprep.subr.bf16.mxu0 0
  %364 = vmatpush1.bf16.msra.mxu0 0
  %365 = vmatprep.subr.bf16.mxu0 0
  %366 = vmatpush1.bf16.msra.mxu0 0
  %367 = vmatprep.subr.bf16.mxu0 0
  %368 = vmatpush1.bf16.msra.mxu0 0
  %369 = vmatprep.subr.bf16.mxu0 0
  %370 = vmatpush1.bf16.msra.mxu0 0
  %371 = vmatprep.subr.bf16.mxu0 0
  %372 = vmatpush1.bf16.msra.mxu0 0
  %373 = vmatprep.subr.bf16.mxu0 0
  %374 = vmatpush1.bf16.msra.mxu0 0
  %375 = vmatprep.subr.bf16.mxu0 0
  %376 = vmatpush1.bf16.msra.mxu0 0
  %377 = vmatprep.mubr.bf16.mxu0 0
  %378 = vmatmul.mubr.bf16.gmra.mrb[0].mxu0 %v343
  %v379 = vpop.f32.mrb[0].mxu0
  %v380 = vadd.f32 0.0, %v379
  %v381 = vpop.f32.mrb[0].mxu0
  %v382 = vpop.f32.mrb[0].mxu0
  %v383 = vpop.f32.mrb[0].mxu0
  %384 = vdwg.mxu0
  %v385 = vadd.f32 %v339, %v380
  %v386 = vxor.u32 %v385, 2147483648
  %v387 = vmul.f32 %v386, 1.442695
  %v388 = vpow.pop %v387
  %v389 = vadd.f32 %v388, 1.0
  %v390 = vrcp.pop %v389
  %v391 = vmul.f32 1.0, %v390
  %v392 = vtanh.pop %v385
  %v393 = vmul.f32 %v391, %v322
  %395 = vrot.lane.b32.xlu0 %v392, 32
  %v396 = vpop.permute.xlu0 %395
  %v398 = vmul.f32 %v391, %v396
  %400 = vrot.lane.b32.xlu0 %v398, 32
  %v401 = vpop.permute.xlu0 %400
  %v403 = vadd.f32 %v393, %v401
  %v404 = vtanh.pop %v403
  %406 = vrot.lane.b32.xlu0 %v404, 32
  %v407 = vpop.permute.xlu0 %406
  %v409 = vmul.f32 %v391, %v407
  %v410 = vpack.c.bf16 %v409, %v409
  %v412 = vunpack.c.l.b16 %v410
  %v413 = vpack.c.b16 %v412, %v412
  %414 = vrot.lane.b32.xlu0 %v413, 64
  %v415 = vpop.permute.xlu0 %414
  %s417 = scalar_lea.vmem [#allocation2], 8
  %418 = vst.msk [vmem:[%s417] sm:$0xf] %vm255, %v415
  %s419 = scalar_lea.vmem [#allocation3], 24
  %v420 = vld [vmem:[%s419] sm:$0xff]
  %421 = vrot.lane.b32.xlu0 %v410, 64
  %v422 = vpop.permute.xlu0 %421
  %v424 = vsel %vm179, %v422, 0
  %426 = vmatprep.subr.bf16.mxu0 0
  %427 = vmatpush1.bf16.msra.mxu0 %v175
  %428 = vmatprep.subr.bf16.mxu0 0
  %429 = vmatpush1.bf16.msra.mxu0 %v176
  %430 = vmatprep.subr.bf16.mxu0 0
  %431 = vmatpush1.bf16.msra.mxu0 0
  %432 = vmatprep.subr.bf16.mxu0 0
  %433 = vmatpush1.bf16.msra.mxu0 0
  %434 = vmatprep.subr.bf16.mxu0 0
  %435 = vmatpush1.bf16.msra.mxu0 0
  %436 = vmatprep.subr.bf16.mxu0 0
  %437 = vmatpush1.bf16.msra.mxu0 0
  %438 = vmatprep.subr.bf16.mxu0 0
  %439 = vmatpush1.bf16.msra.mxu0 0
  %440 = vmatprep.subr.bf16.mxu0 0
  %441 = vmatpush1.bf16.msra.mxu0 0
  %442 = vmatprep.subr.bf16.mxu0 0
  %443 = vmatpush1.bf16.msra.mxu0 0
  %444 = vmatprep.subr.bf16.mxu0 0
  %445 = vmatpush1.bf16.msra.mxu0 0
  %446 = vmatprep.subr.bf16.mxu0 0
  %447 = vmatpush1.bf16.msra.mxu0 0
  %448 = vmatprep.subr.bf16.mxu0 0
  %449 = vmatpush1.bf16.msra.mxu0 0
  %450 = vmatprep.subr.bf16.mxu0 0
  %451 = vmatpush1.bf16.msra.mxu0 0
  %452 = vmatprep.subr.bf16.mxu0 0
  %453 = vmatpush1.bf16.msra.mxu0 0
  %454 = vmatprep.subr.bf16.mxu0 0
  %455 = vmatpush1.bf16.msra.mxu0 0
  %456 = vmatprep.subr.bf16.mxu0 0
  %457 = vmatpush1.bf16.msra.mxu0 0
  %458 = vmatprep.mubr.bf16.mxu0 0
  %459 = vmatmul.mubr.bf16.gmra.mrb[0].mxu0 %v424
  %v460 = vpop.f32.mrb[0].mxu0
  %v461 = vadd.f32 0.0, %v460
  %v462 = vpop.f32.mrb[0].mxu0
  %v463 = vpop.f32.mrb[0].mxu0
  %v464 = vpop.f32.mrb[0].mxu0
  %465 = vdwg.mxu0
  %v466 = vadd.f32 %v420, %v461
  %v467 = vxor.u32 %v466, 2147483648
  %v468 = vmul.f32 %v467, 1.442695
  %v469 = vpow.pop %v468
  %v470 = vadd.f32 %v469, 1.0
  %v471 = vrcp.pop %v470
  %v472 = vmul.f32 1.0, %v471
  %v473 = vtanh.pop %v466
  %v474 = vmul.f32 %v472, %v403
  %476 = vrot.lane.b32.xlu0 %v473, 32
  %v477 = vpop.permute.xlu0 %476
  %v479 = vmul.f32 %v472, %v477
  %481 = vrot.lane.b32.xlu0 %v479, 32
  %v482 = vpop.permute.xlu0 %481
  %v484 = vadd.f32 %v474, %v482
  %v485 = vtanh.pop %v484
  %487 = vrot.lane.b32.xlu0 %v485, 32
  %v488 = vpop.permute.xlu0 %487
  %v490 = vmul.f32 %v472, %v488
  %v491 = vpack.c.bf16 %v490, %v490
  %v493 = vunpack.c.l.b16 %v491
  %v494 = vpack.c.b16 %v493, %v493
  %495 = vrot.lane.b32.xlu0 %v494, 64
  %v496 = vpop.permute.xlu0 %495
  %s498 = scalar_lea.vmem [#allocation2], 12
  %499 = vst.msk [vmem:[%s498] sm:$0xf] %vm255, %v496
  %s500 = scalar_lea.vmem [#allocation3], 32
  %v501 = vld [vmem:[%s500] sm:$0xff]
  %502 = vrot.lane.b32.xlu0 %v491, 64
  %v503 = vpop.permute.xlu0 %502
  %v505 = vsel %vm179, %v503, 0
  %507 = vmatprep.subr.bf16.mxu0 0
  %508 = vmatpush1.bf16.msra.mxu0 %v175
  %509 = vmatprep.subr.bf16.mxu0 0
  %510 = vmatpush1.bf16.msra.mxu0 %v176
  %511 = vmatprep.subr.bf16.mxu0 0
  %512 = vmatpush1.bf16.msra.mxu0 0
  %513 = vmatprep.subr.bf16.mxu0 0
  %514 = vmatpush1.bf16.msra.mxu0 0
  %515 = vmatprep.subr.bf16.mxu0 0
  %516 = vmatpush1.bf16.msra.mxu0 0
  %517 = vmatprep.subr.bf16.mxu0 0
  %518 = vmatpush1.bf16.msra.mxu0 0
  %519 = vmatprep.subr.bf16.mxu0 0
  %520 = vmatpush1.bf16.msra.mxu0 0
  %521 = vmatprep.subr.bf16.mxu0 0
  %522 = vmatpush1.bf16.msra.mxu0 0
  %523 = vmatprep.subr.bf16.mxu0 0
  %524 = vmatpush1.bf16.msra.mxu0 0
  %525 = vmatprep.subr.bf16.mxu0 0
  %526 = vmatpush1.bf16.msra.mxu0 0
  %527 = vmatprep.subr.bf16.mxu0 0
  %528 = vmatpush1.bf16.msra.mxu0 0
  %529 = vmatprep.subr.bf16.mxu0 0
  %530 = vmatpush1.bf16.msra.mxu0 0
  %531 = vmatprep.subr.bf16.mxu0 0
  %532 = vmatpush1.bf16.msra.mxu0 0
  %533 = vmatprep.subr.bf16.mxu0 0
  %534 = vmatpush1.bf16.msra.mxu0 0
  %535 = vmatprep.subr.bf16.mxu0 0
  %536 = vmatpush1.bf16.msra.mxu0 0
  %537 = vmatprep.subr.bf16.mxu0 0
  %538 = vmatpush1.bf16.msra.mxu0 0
  %539 = vmatprep.mubr.bf16.mxu0 0
  %540 = vmatmul.mubr.bf16.gmra.mrb[0].mxu0 %v505
  %v541 = vpop.f32.mrb[0].mxu0
  %v542 = vadd.f32 0.0, %v541
  %v543 = vpop.f32.mrb[0].mxu0
  %v544 = vpop.f32.mrb[0].mxu0
  %v545 = vpop.f32.mrb[0].mxu0
  %546 = vdwg.mxu0
  %v547 = vadd.f32 %v501, %v542
  %v548 = vxor.u32 %v547, 2147483648
  %v549 = vmul.f32 %v548, 1.442695
  %v550 = vpow.pop %v549
  %v551 = vadd.f32 %v550, 1.0
  %v552 = vrcp.pop %v551
  %v553 = vmul.f32 1.0, %v552
  %v554 = vtanh.pop %v547
  %v555 = vmul.f32 %v553, %v484
  %557 = vrot.lane.b32.xlu0 %v554, 32
  %v558 = vpop.permute.xlu0 %557
  %v560 = vmul.f32 %v553, %v558
  %562 = vrot.lane.b32.xlu0 %v560, 32
  %v563 = vpop.permute.xlu0 %562
  %v565 = vadd.f32 %v555, %v563
  %v566 = vtanh.pop %v565
  %568 = vrot.lane.b32.xlu0 %v566, 32
  %v569 = vpop.permute.xlu0 %568
  %v571 = vmul.f32 %v553, %v569
  %v572 = vpack.c.bf16 %v571, %v571
  %v574 = vunpack.c.l.b16 %v572
  %v575 = vpack.c.b16 %v574, %v574
  %576 = vrot.lane.b32.xlu0 %v575, 64
  %v577 = vpop.permute.xlu0 %576
  %s579 = scalar_lea.vmem [#allocation2], 16
  %580 = vst.msk [vmem:[%s579] sm:$0xf] %vm255, %v577
  %s581 = scalar_lea.vmem [#allocation3], 40
  %v582 = vld [vmem:[%s581] sm:$0xff]
  %583 = vrot.lane.b32.xlu0 %v572, 64
  %v584 = vpop.permute.xlu0 %583
  %v586 = vsel %vm179, %v584, 0
  %588 = vmatprep.subr.bf16.mxu0 0
  %589 = vmatpush1.bf16.msra.mxu0 %v175
  %590 = vmatprep.subr.bf16.mxu0 0
  %591 = vmatpush1.bf16.msra.mxu0 %v176
  %592 = vmatprep.subr.bf16.mxu0 0
  %593 = vmatpush1.bf16.msra.mxu0 0
  %594 = vmatprep.subr.bf16.mxu0 0
  %595 = vmatpush1.bf16.msra.mxu0 0
  %596 = vmatprep.subr.bf16.mxu0 0
  %597 = vmatpush1.bf16.msra.mxu0 0
  %598 = vmatprep.subr.bf16.mxu0 0
  %599 = vmatpush1.bf16.msra.mxu0 0
  %600 = vmatprep.subr.bf16.mxu0 0
  %601 = vmatpush1.bf16.msra.mxu0 0
  %602 = vmatprep.subr.bf16.mxu0 0
  %603 = vmatpush1.bf16.msra.mxu0 0
  %604 = vmatprep.subr.bf16.mxu0 0
  %605 = vmatpush1.bf16.msra.mxu0 0
  %606 = vmatprep.subr.bf16.mxu0 0
  %607 = vmatpush1.bf16.msra.mxu0 0
  %608 = vmatprep.subr.bf16.mxu0 0
  %609 = vmatpush1.bf16.msra.mxu0 0
  %610 = vmatprep.subr.bf16.mxu0 0
  %611 = vmatpush1.bf16.msra.mxu0 0
  %612 = vmatprep.subr.bf16.mxu0 0
  %613 = vmatpush1.bf16.msra.mxu0 0
  %614 = vmatprep.subr.bf16.mxu0 0
  %615 = vmatpush1.bf16.msra.mxu0 0
  %616 = vmatprep.subr.bf16.mxu0 0
  %617 = vmatpush1.bf16.msra.mxu0 0
  %618 = vmatprep.subr.bf16.mxu0 0
  %619 = vmatpush1.bf16.msra.mxu0 0
  %620 = vmatprep.mubr.bf16.mxu0 0
  %621 = vmatmul.mubr.bf16.gmra.mrb[0].mxu0 %v586
  %v622 = vpop.f32.mrb[0].mxu0
  %v623 = vadd.f32 0.0, %v622
  %v624 = vpop.f32.mrb[0].mxu0
  %v625 = vpop.f32.mrb[0].mxu0
  %v626 = vpop.f32.mrb[0].mxu0
  %627 = vdwg.mxu0
  %v628 = vadd.f32 %v582, %v623
  %v629 = vxor.u32 %v628, 2147483648
  %v630 = vmul.f32 %v629, 1.442695
  %v631 = vpow.pop %v630
  %v632 = vadd.f32 %v631, 1.0
  %v633 = vrcp.pop %v632
  %v634 = vmul.f32 1.0, %v633
  %v635 = vtanh.pop %v628
  %v636 = vmul.f32 %v634, %v565
  %638 = vrot.lane.b32.xlu0 %v635, 32
  %v639 = vpop.permute.xlu0 %638
  %v641 = vmul.f32 %v634, %v639
  %643 = vrot.lane.b32.xlu0 %v641, 32
  %v644 = vpop.permute.xlu0 %643
  %v646 = vadd.f32 %v636, %v644
  %v647 = vtanh.pop %v646
  %649 = vrot.lane.b32.xlu0 %v647, 32
  %v650 = vpop.permute.xlu0 %649
  %v652 = vmul.f32 %v634, %v650
  %v653 = vpack.c.bf16 %v652, %v652
  %v655 = vunpack.c.l.b16 %v653
  %v656 = vpack.c.b16 %v655, %v655
  %657 = vrot.lane.b32.xlu0 %v656, 64
  %v658 = vpop.permute.xlu0 %657
  %s660 = scalar_lea.vmem [#allocation2], 20
  %661 = vst.msk [vmem:[%s660] sm:$0xf] %vm255, %v658
  %s662 = scalar_lea.vmem [#allocation3], 48
  %v663 = vld [vmem:[%s662] sm:$0xff]
  %664 = vrot.lane.b32.xlu0 %v653, 64
  %v665 = vpop.permute.xlu0 %664
  %v667 = vsel %vm179, %v665, 0
  %669 = vmatprep.subr.bf16.mxu0 0
  %670 = vmatpush1.bf16.msra.mxu0 %v175
  %671 = vmatprep.subr.bf16.mxu0 0
  %672 = vmatpush1.bf16.msra.mxu0 %v176
  %673 = vmatprep.subr.bf16.mxu0 0
  %674 = vmatpush1.bf16.msra.mxu0 0
  %675 = vmatprep.subr.bf16.mxu0 0
  %676 = vmatpush1.bf16.msra.mxu0 0
  %677 = vmatprep.subr.bf16.mxu0 0
  %678 = vmatpush1.bf16.msra.mxu0 0
  %679 = vmatprep.subr.bf16.mxu0 0
  %680 = vmatpush1.bf16.msra.mxu0 0
  %681 = vmatprep.subr.bf16.mxu0 0
  %682 = vmatpush1.bf16.msra.mxu0 0
  %683 = vmatprep.subr.bf16.mxu0 0
  %684 = vmatpush1.bf16.msra.mxu0 0
  %685 = vmatprep.subr.bf16.mxu0 0
  %686 = vmatpush1.bf16.msra.mxu0 0
  %687 = vmatprep.subr.bf16.mxu0 0
  %688 = vmatpush1.bf16.msra.mxu0 0
  %689 = vmatprep.subr.bf16.mxu0 0
  %690 = vmatpush1.bf16.msra.mxu0 0
  %691 = vmatprep.subr.bf16.mxu0 0
  %692 = vmatpush1.bf16.msra.mxu0 0
  %693 = vmatprep.subr.bf16.mxu0 0
  %694 = vmatpush1.bf16.msra.mxu0 0
  %695 = vmatprep.subr.bf16.mxu0 0
  %696 = vmatpush1.bf16.msra.mxu0 0
  %697 = vmatprep.subr.bf16.mxu0 0
  %698 = vmatpush1.bf16.msra.mxu0 0
  %699 = vmatprep.subr.bf16.mxu0 0
  %700 = vmatpush1.bf16.msra.mxu0 0
  %701 = vmatprep.mubr.bf16.mxu0 0
  %702 = vmatmul.mubr.bf16.gmra.mrb[0].mxu0 %v667
  %v703 = vpop.f32.mrb[0].mxu0
  %v704 = vadd.f32 0.0, %v703
  %v705 = vpop.f32.mrb[0].mxu0
  %v706 = vpop.f32.mrb[0].mxu0
  %v707 = vpop.f32.mrb[0].mxu0
  %708 = vdwg.mxu0
  %v709 = vadd.f32 %v663, %v704
  %v710 = vxor.u32 %v709, 2147483648
  %v711 = vmul.f32 %v710, 1.442695
  %v712 = vpow.pop %v711
  %v713 = vadd.f32 %v712, 1.0
  %v714 = vrcp.pop %v713
  %v715 = vmul.f32 1.0, %v714
  %v716 = vtanh.pop %v709
  %v717 = vmul.f32 %v715, %v646
  %719 = vrot.lane.b32.xlu0 %v716, 32
  %v720 = vpop.permute.xlu0 %719
  %v722 = vmul.f32 %v715, %v720
  %724 = vrot.lane.b32.xlu0 %v722, 32
  %v725 = vpop.permute.xlu0 %724
  %v727 = vadd.f32 %v717, %v725
  %v728 = vtanh.pop %v727
  %730 = vrot.lane.b32.xlu0 %v728, 32
  %v731 = vpop.permute.xlu0 %730
  %v733 = vmul.f32 %v715, %v731
  %v734 = vpack.c.bf16 %v733, %v733
  %v736 = vunpack.c.l.b16 %v734
  %v737 = vpack.c.b16 %v736, %v736
  %738 = vrot.lane.b32.xlu0 %v737, 64
  %v739 = vpop.permute.xlu0 %738
  %s741 = scalar_lea.vmem [#allocation2], 24
  %742 = vst.msk [vmem:[%s741] sm:$0xf] %vm255, %v739
  %s743 = scalar_lea.vmem [#allocation3], 56
  %v744 = vld [vmem:[%s743] sm:$0xff]
  %745 = vrot.lane.b32.xlu0 %v734, 64
  %v746 = vpop.permute.xlu0 %745
  %v748 = vsel %vm179, %v746, 0
  %750 = vmatprep.subr.bf16.mxu0 0
  %751 = vmatpush1.bf16.msra.mxu0 %v175
  %752 = vmatprep.subr.bf16.mxu0 0
  %753 = vmatpush1.bf16.msra.mxu0 %v176
  %754 = vmatprep.subr.bf16.mxu0 0
  %755 = vmatpush1.bf16.msra.mxu0 0
  %756 = vmatprep.subr.bf16.mxu0 0
  %757 = vmatpush1.bf16.msra.mxu0 0
  %758 = vmatprep.subr.bf16.mxu0 0
  %759 = vmatpush1.bf16.msra.mxu0 0
  %760 = vmatprep.subr.bf16.mxu0 0
  %761 = vmatpush1.bf16.msra.mxu0 0
  %762 = vmatprep.subr.bf16.mxu0 0
  %763 = vmatpush1.bf16.msra.mxu0 0
  %764 = vmatprep.subr.bf16.mxu0 0
  %765 = vmatpush1.bf16.msra.mxu0 0
  %766 = vmatprep.subr.bf16.mxu0 0
  %767 = vmatpush1.bf16.msra.mxu0 0
  %768 = vmatprep.subr.bf16.mxu0 0
  %769 = vmatpush1.bf16.msra.mxu0 0
  %770 = vmatprep.subr.bf16.mxu0 0
  %771 = vmatpush1.bf16.msra.mxu0 0
  %772 = vmatprep.subr.bf16.mxu0 0
  %773 = vmatpush1.bf16.msra.mxu0 0
  %774 = vmatprep.subr.bf16.mxu0 0
  %775 = vmatpush1.bf16.msra.mxu0 0
  %776 = vmatprep.subr.bf16.mxu0 0
  %777 = vmatpush1.bf16.msra.mxu0 0
  %778 = vmatprep.subr.bf16.mxu0 0
  %779 = vmatpush1.bf16.msra.mxu0 0
  %780 = vmatprep.subr.bf16.mxu0 0
  %781 = vmatpush1.bf16.msra.mxu0 0
  %782 = vmatprep.mubr.bf16.mxu0 0
  %783 = vmatmul.mubr.bf16.gmra.mrb[0].mxu0 %v748
  %v784 = vpop.f32.mrb[0].mxu0
  %v785 = vadd.f32 0.0, %v784
  %v786 = vpop.f32.mrb[0].mxu0
  %v787 = vpop.f32.mrb[0].mxu0
  %v788 = vpop.f32.mrb[0].mxu0
  %789 = vdwg.mxu0
  %v790 = vadd.f32 %v744, %v785
  %v791 = vxor.u32 %v790, 2147483648
  %v792 = vmul.f32 %v791, 1.442695
  %v793 = vpow.pop %v792
  %v794 = vadd.f32 %v793, 1.0
  %v795 = vrcp.pop %v794
  %v796 = vmul.f32 1.0, %v795
  %v797 = vtanh.pop %v790
  %v798 = vmul.f32 %v796, %v727
  %800 = vrot.lane.b32.xlu0 %v797, 32
  %v801 = vpop.permute.xlu0 %800
  %v803 = vmul.f32 %v796, %v801
  %805 = vrot.lane.b32.xlu0 %v803, 32
  %v806 = vpop.permute.xlu0 %805
  %v808 = vadd.f32 %v798, %v806
  %v809 = vtanh.pop %v808
  %811 = vrot.lane.b32.xlu0 %v809, 32
  %v812 = vpop.permute.xlu0 %811
  %v814 = vmul.f32 %v796, %v812
  %v815 = vpack.c.bf16 %v814, %v814
  %v817 = vunpack.c.l.b16 %v815
  %v818 = vpack.c.b16 %v817, %v817
  %819 = vrot.lane.b32.xlu0 %v818, 64
  %v820 = vpop.permute.xlu0 %819
  %s822 = scalar_lea.vmem [#allocation2], 28
  %823 = vst.msk [vmem:[%s822] sm:$0xf] %vm255, %v820
  %v824 = vld [vmem:[%s4] sm:$0xf]
  %v825 = vld [vmem:[%s4 + $0x4] sm:$0xf]
  %v826 = vld [vmem:[%s4 + $0x8] sm:$0xf]
  %v827 = vld [vmem:[%s4 + $0xc] sm:$0xf]
  %v828 = vld [vmem:[%s5] sm:$0xf]
  %v829 = vld [vmem:[%s5 + $0x4] sm:$0xf]
  %v830 = vld [vmem:[%s5 + $0x8] sm:$0xf]
  %v831 = vld [vmem:[%s5 + $0xc] sm:$0xf]
  %v832 = vld [vmem:[%s6] sm:$0x1]
  %v833 = vld [vmem:[#allocation2] sm:$0xf]
  %v834 = vld [vmem:[#allocation2 + $0x4] sm:$0xf]
  %v835 = vld [vmem:[#allocation2 + $0x8] sm:$0xf]
  %v836 = vld [vmem:[#allocation2 + $0xc] sm:$0xf]
  %v837 = vld [vmem:[#allocation2 + $0x10] sm:$0xf]
  %v838 = vld [vmem:[#allocation2 + $0x14] sm:$0xf]
  %v839 = vld [vmem:[#allocation2 + $0x18] sm:$0xf]
  %v840 = vld [vmem:[#allocation2 + $0x1c] sm:$0xf]
  %v842 = vlaneseq
  %v843 = vshrl.u32 %v842, 7
  %v844 = vsub.s32 0, %v843
  %v845 = vrot.slane %v832, %v844
  %v855 = vunpack.c.l.b16 %v833
  %v856 = vunpack.c.l.b16 %v834
  %v857 = vunpack.c.l.b16 %v835
  %v858 = vunpack.c.l.b16 %v836
  %v859 = vunpack.c.l.b16 %v837
  %v860 = vunpack.c.l.b16 %v838
  %v861 = vunpack.c.l.b16 %v839
  %v862 = vunpack.c.l.b16 %v840
  %v863 = vpack.c.b16 %v856, %v855
  %v864 = vpack.c.b16 %v858, %v857
  %v865 = vpack.c.b16 %v860, %v859
  %v866 = vpack.c.b16 %v862, %v861
  %v871 = vunpack.c.l.b16 %v824
  %v872 = vunpack.c.l.b16 %v825
  %v873 = vunpack.c.l.b16 %v826
  %v874 = vunpack.c.l.b16 %v827
  %v875 = vpack.c.b16 %v872, %v871
  %v876 = vpack.c.b16 %v874, %v873
  %v880 = vsel %vm179, %v863, 0
  %v883 = vsel %vm179, %v864, 0
  %v886 = vsel %vm179, %v865, 0
  %v889 = vsel %vm179, %v866, 0
  %891 = vmatprep.subr.bf16.mxu0 0
  %892 = vmatpush1.bf16.msra.mxu0 %v875
  %893 = vmatprep.subr.bf16.mxu0 0
  %894 = vmatpush1.bf16.msra.mxu0 %v876
  %895 = vmatprep.subr.bf16.mxu0 0
  %896 = vmatpush1.bf16.msra.mxu0 0
  %897 = vmatprep.subr.bf16.mxu0 0
  %898 = vmatpush1.bf16.msra.mxu0 0
  %899 = vmatprep.subr.bf16.mxu0 0
  %900 = vmatpush1.bf16.msra.mxu0 0
  %901 = vmatprep.subr.bf16.mxu0 0
  %902 = vmatpush1.bf16.msra.mxu0 0
  %903 = vmatprep.subr.bf16.mxu0 0
  %904 = vmatpush1.bf16.msra.mxu0 0
  %905 = vmatprep.subr.bf16.mxu0 0
  %906 = vmatpush1.bf16.msra.mxu0 0
  %907 = vmatprep.subr.bf16.mxu0 0
  %908 = vmatpush1.bf16.msra.mxu0 0
  %909 = vmatprep.subr.bf16.mxu0 0
  %910 = vmatpush1.bf16.msra.mxu0 0
  %911 = vmatprep.subr.bf16.mxu0 0
  %912 = vmatpush1.bf16.msra.mxu0 0
  %913 = vmatprep.subr.bf16.mxu0 0
  %914 = vmatpush1.bf16.msra.mxu0 0
  %915 = vmatprep.subr.bf16.mxu0 0
  %916 = vmatpush1.bf16.msra.mxu0 0
  %917 = vmatprep.subr.bf16.mxu0 0
  %918 = vmatpush1.bf16.msra.mxu0 0
  %919 = vmatprep.subr.bf16.mxu0 0
  %920 = vmatpush1.bf16.msra.mxu0 0
  %921 = vmatprep.subr.bf16.mxu0 0
  %922 = vmatpush1.bf16.msra.mxu0 0
  %923 = vmatprep.mubr.bf16.mxu0 0
  %924 = vmatmul.mubr.bf16.gmra.mrb[0].mxu0 %v880
  %v925 = vpop.f32.mrb[0].mxu0
  %v926 = vadd.f32 %v845, %v925
  %v927 = vpop.f32.mrb[0].mxu0
  %v928 = vpop.f32.mrb[0].mxu0
  %v929 = vadd.f32 %v845, %v928
  %v930 = vpop.f32.mrb[0].mxu0
  %931 = vmatprep.mubr.bf16.mxu0 0
  %932 = vmatmul.mubr.bf16.gmra.mrb[0].mxu0 %v883
  %v933 = vpop.f32.mrb[0].mxu0
  %v934 = vadd.f32 %v845, %v933
  %v935 = vpop.f32.mrb[0].mxu0
  %v936 = vpop.f32.mrb[0].mxu0
  %v937 = vadd.f32 %v845, %v936
  %v938 = vpop.f32.mrb[0].mxu0
  %939 = vmatprep.mubr.bf16.mxu0 0
  %940 = vmatmul.mubr.bf16.gmra.mrb[0].mxu0 %v886
  %v941 = vpop.f32.mrb[0].mxu0
  %v942 = vadd.f32 %v845, %v941
  %v943 = vpop.f32.mrb[0].mxu0
  %v944 = vpop.f32.mrb[0].mxu0
  %v945 = vadd.f32 %v845, %v944
  %v946 = vpop.f32.mrb[0].mxu0
  %947 = vmatprep.mubr.bf16.mxu0 0
  %948 = vmatmul.mubr.bf16.gmra.mrb[0].mxu0 %v889
  %v949 = vpop.f32.mrb[0].mxu0
  %v950 = vadd.f32 %v845, %v949
  %v951 = vpop.f32.mrb[0].mxu0
  %v952 = vpop.f32.mrb[0].mxu0
  %v953 = vadd.f32 %v845, %v952
  %v954 = vpop.f32.mrb[0].mxu0
  %955 = vdwg.mxu0
  %956 = vst [vmem:[#allocation3] sm:$0xff] %v926
  %957 = vst [vmem:[#allocation3 + $0x8] sm:$0xff] %v929
  %958 = vst [vmem:[#allocation3 + $0x10] sm:$0xff] %v934
  %959 = vst [vmem:[#allocation3 + $0x18] sm:$0xff] %v937
  %960 = vst [vmem:[#allocation3 + $0x20] sm:$0xff] %v942
  %961 = vst [vmem:[#allocation3 + $0x28] sm:$0xff] %v945
  %962 = vst [vmem:[#allocation3 + $0x30] sm:$0xff] %v950
  %963 = vst [vmem:[#allocation3 + $0x38] sm:$0xff] %v953
  %v964 = vld [vmem:[#allocation3] sm:$0xff]
  %v969 = vunpack.c.l.b16 %v828
  %v970 = vunpack.c.l.b16 %v829
  %v971 = vunpack.c.l.b16 %v830
  %v972 = vunpack.c.l.b16 %v831
  %v973 = vpack.c.b16 %v970, %v969
  %v974 = vpack.c.b16 %v972, %v971
  %977 = vmatprep.subr.bf16.mxu0 0
  %978 = vmatpush1.bf16.msra.mxu0 %v973
  %979 = vmatprep.subr.bf16.mxu0 0
  %980 = vmatpush1.bf16.msra.mxu0 %v974
  %981 = vmatprep.subr.bf16.mxu0 0
  %982 = vmatpush1.bf16.msra.mxu0 0
  %983 = vmatprep.subr.bf16.mxu0 0
  %984 = vmatpush1.bf16.msra.mxu0 0
  %985 = vmatprep.subr.bf16.mxu0 0
  %986 = vmatpush1.bf16.msra.mxu0 0
  %987 = vmatprep.subr.bf16.mxu0 0
  %988 = vmatpush1.bf16.msra.mxu0 0
  %989 = vmatprep.subr.bf16.mxu0 0
  %990 = vmatpush1.bf16.msra.mxu0 0
  %991 = vmatprep.subr.bf16.mxu0 0
  %992 = vmatpush1.bf16.msra.mxu0 0
  %993 = vmatprep.subr.bf16.mxu0 0
  %994 = vmatpush1.bf16.msra.mxu0 0
  %995 = vmatprep.subr.bf16.mxu0 0
  %996 = vmatpush1.bf16.msra.mxu0 0
  %997 = vmatprep.subr.bf16.mxu0 0
  %998 = vmatpush1.bf16.msra.mxu0 0
  %999 = vmatprep.subr.bf16.mxu0 0
  %1000 = vmatpush1.bf16.msra.mxu0 0
  %1001 = vmatprep.subr.bf16.mxu0 0
  %1002 = vmatpush1.bf16.msra.mxu0 0
  %1003 = vmatprep.subr.bf16.mxu0 0
  %1004 = vmatpush1.bf16.msra.mxu0 0
  %1005 = vmatprep.subr.bf16.mxu0 0
  %1006 = vmatpush1.bf16.msra.mxu0 0
  %1007 = vmatprep.subr.bf16.mxu0 0
  %1008 = vmatpush1.bf16.msra.mxu0 0
  %1009 = vmatprep.mubr.bf16.mxu0 0
  %1010 = vmatmul.mubr.bf16.gmra.mrb[0].mxu0 %v181
  %v1011 = vpop.f32.mrb[0].mxu0
  %v1012 = vadd.f32 0.0, %v1011
  %v1013 = vpop.f32.mrb[0].mxu0
  %v1014 = vpop.f32.mrb[0].mxu0
  %v1015 = vpop.f32.mrb[0].mxu0
  %1016 = vdwg.mxu0
  %v1017 = vadd.f32 %v964, %v1012
  %v1018 = vxor.u32 %v1017, 2147483648
  %v1019 = vmul.f32 %v1018, 1.442695
  %v1020 = vpow.pop %v1019
  %v1021 = vadd.f32 %v1020, 1.0
  %v1022 = vrcp.pop %v1021
  %v1023 = vmul.f32 1.0, %v1022
  %v1024 = vtanh.pop %v1017
  %v1025 = vmul.f32 %v1023, 0.0
  %1027 = vrot.lane.b32.xlu0 %v1024, 32
  %v1028 = vpop.permute.xlu0 %1027
  %v1030 = vmul.f32 %v1023, %v1028
  %1032 = vrot.lane.b32.xlu0 %v1030, 32
  %v1033 = vpop.permute.xlu0 %1032
  %v1035 = vadd.f32 %v1025, %v1033
  %v1036 = vtanh.pop %v1035
  %1038 = vrot.lane.b32.xlu0 %v1036, 32
  %v1039 = vpop.permute.xlu0 %1038
  %v1041 = vmul.f32 %v1023, %v1039
  %v1042 = vld [vmem:[%s257] sm:$0xff]
  %v1043 = vpack.c.bf16 %v1041, %v1041
  %1045 = vrot.lane.b32.xlu0 %v1043, 64
  %v1046 = vpop.permute.xlu0 %1045
  %v1048 = vsel %vm179, %v1046, 0
  %1050 = vmatprep.subr.bf16.mxu0 0
  %1051 = vmatpush1.bf16.msra.mxu0 %v973
  %1052 = vmatprep.subr.bf16.mxu0 0
  %1053 = vmatpush1.bf16.msra.mxu0 %v974
  %1054 = vmatprep.subr.bf16.mxu0 0
  %1055 = vmatpush1.bf16.msra.mxu0 0
  %1056 = vmatprep.subr.bf16.mxu0 0
  %1057 = vmatpush1.bf16.msra.mxu0 0
  %1058 = vmatprep.subr.bf16.mxu0 0
  %1059 = vmatpush1.bf16.msra.mxu0 0
  %1060 = vmatprep.subr.bf16.mxu0 0
  %1061 = vmatpush1.bf16.msra.mxu0 0
  %1062 = vmatprep.subr.bf16.mxu0 0
  %1063 = vmatpush1.bf16.msra.mxu0 0
  %1064 = vmatprep.subr.bf16.mxu0 0
  %1065 = vmatpush1.bf16.msra.mxu0 0
  %1066 = vmatprep.subr.bf16.mxu0 0
  %1067 = vmatpush1.bf16.msra.mxu0 0
  %1068 = vmatprep.subr.bf16.mxu0 0
  %1069 = vmatpush1.bf16.msra.mxu0 0
  %1070 = vmatprep.subr.bf16.mxu0 0
  %1071 = vmatpush1.bf16.msra.mxu0 0
  %1072 = vmatprep.subr.bf16.mxu0 0
  %1073 = vmatpush1.bf16.msra.mxu0 0
  %1074 = vmatprep.subr.bf16.mxu0 0
  %1075 = vmatpush1.bf16.msra.mxu0 0
  %1076 = vmatprep.subr.bf16.mxu0 0
  %1077 = vmatpush1.bf16.msra.mxu0 0
  %1078 = vmatprep.subr.bf16.mxu0 0
  %1079 = vmatpush1.bf16.msra.mxu0 0
  %1080 = vmatprep.subr.bf16.mxu0 0
  %1081 = vmatpush1.bf16.msra.mxu0 0
  %1082 = vmatprep.mubr.bf16.mxu0 0
  %1083 = vmatmul.mubr.bf16.gmra.mrb[0].mxu0 %v1048
  %v1084 = vpop.f32.mrb[0].mxu0
  %v1085 = vadd.f32 0.0, %v1084
  %v1086 = vpop.f32.mrb[0].mxu0
  %v1087 = vpop.f32.mrb[0].mxu0
  %v1088 = vpop.f32.mrb[0].mxu0
  %1089 = vdwg.mxu0
  %v1090 = vadd.f32 %v1042, %v1085
  %v1091 = vxor.u32 %v1090, 2147483648
  %v1092 = vmul.f32 %v1091, 1.442695
  %v1093 = vpow.pop %v1092
  %v1094 = vadd.f32 %v1093, 1.0
  %v1095 = vrcp.pop %v1094
  %v1096 = vmul.f32 1.0, %v1095
  %v1097 = vtanh.pop %v1090
  %v1098 = vmul.f32 %v1096, %v1035
  %1100 = vrot.lane.b32.xlu0 %v1097, 32
  %v1101 = vpop.permute.xlu0 %1100
  %v1103 = vmul.f32 %v1096, %v1101
  %1105 = vrot.lane.b32.xlu0 %v1103, 32
  %v1106 = vpop.permute.xlu0 %1105
  %v1108 = vadd.f32 %v1098, %v1106
  %v1109 = vtanh.pop %v1108
  %1111 = vrot.lane.b32.xlu0 %v1109, 32
  %v1112 = vpop.permute.xlu0 %1111
  %v1114 = vmul.f32 %v1096, %v1112
  %v1115 = vld [vmem:[%s338] sm:$0xff]
  %v1116 = vpack.c.bf16 %v1114, %v1114
  %1118 = vrot.lane.b32.xlu0 %v1116, 64
  %v1119 = vpop.permute.xlu0 %1118
  %v1121 = vsel %vm179, %v1119, 0
  %1123 = vmatprep.subr.bf16.mxu0 0
  %1124 = vmatpush1.bf16.msra.mxu0 %v973
  %1125 = vmatprep.subr.bf16.mxu0 0
  %1126 = vmatpush1.bf16.msra.mxu0 %v974
  %1127 = vmatprep.subr.bf16.mxu0 0
  %1128 = vmatpush1.bf16.msra.mxu0 0
  %1129 = vmatprep.subr.bf16.mxu0 0
  %1130 = vmatpush1.bf16.msra.mxu0 0
  %1131 = vmatprep.subr.bf16.mxu0 0
  %1132 = vmatpush1.bf16.msra.mxu0 0
  %1133 = vmatprep.subr.bf16.mxu0 0
  %1134 = vmatpush1.bf16.msra.mxu0 0
  %1135 = vmatprep.subr.bf16.mxu0 0
  %1136 = vmatpush1.bf16.msra.mxu0 0
  %1137 = vmatprep.subr.bf16.mxu0 0
  %1138 = vmatpush1.bf16.msra.mxu0 0
  %1139 = vmatprep.subr.bf16.mxu0 0
  %1140 = vmatpush1.bf16.msra.mxu0 0
  %1141 = vmatprep.subr.bf16.mxu0 0
  %1142 = vmatpush1.bf16.msra.mxu0 0
  %1143 = vmatprep.subr.bf16.mxu0 0
  %1144 = vmatpush1.bf16.msra.mxu0 0
  %1145 = vmatprep.subr.bf16.mxu0 0
  %1146 = vmatpush1.bf16.msra.mxu0 0
  %1147 = vmatprep.subr.bf16.mxu0 0
  %1148 = vmatpush1.bf16.msra.mxu0 0
  %1149 = vmatprep.subr.bf16.mxu0 0
  %1150 = vmatpush1.bf16.msra.mxu0 0
  %1151 = vmatprep.subr.bf16.mxu0 0
  %1152 = vmatpush1.bf16.msra.mxu0 0
  %1153 = vmatprep.subr.bf16.mxu0 0
  %1154 = vmatpush1.bf16.msra.mxu0 0
  %1155 = vmatprep.mubr.bf16.mxu0 0
  %1156 = vmatmul.mubr.bf16.gmra.mrb[0].mxu0 %v1121
  %v1157 = vpop.f32.mrb[0].mxu0
  %v1158 = vadd.f32 0.0, %v1157
  %v1159 = vpop.f32.mrb[0].mxu0
  %v1160 = vpop.f32.mrb[0].mxu0
  %v1161 = vpop.f32.mrb[0].mxu0
  %1162 = vdwg.mxu0
  %v1163 = vadd.f32 %v1115, %v1158
  %v1164 = vxor.u32 %v1163, 2147483648
  %v1165 = vmul.f32 %v1164, 1.442695
  %v1166 = vpow.pop %v1165
  %v1167 = vadd.f32 %v1166, 1.0
  %v1168 = vrcp.pop %v1167
  %v1169 = vmul.f32 1.0, %v1168
  %v1170 = vtanh.pop %v1163
  %v1171 = vmul.f32 %v1169, %v1108
  %1173 = vrot.lane.b32.xlu0 %v1170, 32
  %v1174 = vpop.permute.xlu0 %1173
  %v1176 = vmul.f32 %v1169, %v1174
  %1178 = vrot.lane.b32.xlu0 %v1176, 32
  %v1179 = vpop.permute.xlu0 %1178
  %v1181 = vadd.f32 %v1171, %v1179
  %v1182 = vtanh.pop %v1181
  %1184 = vrot.lane.b32.xlu0 %v1182, 32
  %v1185 = vpop.permute.xlu0 %1184
  %v1187 = vmul.f32 %v1169, %v1185
  %v1188 = vld [vmem:[%s419] sm:$0xff]
  %v1189 = vpack.c.bf16 %v1187, %v1187
  %1191 = vrot.lane.b32.xlu0 %v1189, 64
  %v1192 = vpop.permute.xlu0 %1191
  %v1194 = vsel %vm179, %v1192, 0
  %1196 = vmatprep.subr.bf16.mxu0 0
  %1197 = vmatpush1.bf16.msra.mxu0 %v973
  %1198 = vmatprep.subr.bf16.mxu0 0
  %1199 = vmatpush1.bf16.msra.mxu0 %v974
  %1200 = vmatprep.subr.bf16.mxu0 0
  %1201 = vmatpush1.bf16.msra.mxu0 0
  %1202 = vmatprep.subr.bf16.mxu0 0
  %1203 = vmatpush1.bf16.msra.mxu0 0
  %1204 = vmatprep.subr.bf16.mxu0 0
  %1205 = vmatpush1.bf16.msra.mxu0 0
  %1206 = vmatprep.subr.bf16.mxu0 0
  %1207 = vmatpush1.bf16.msra.mxu0 0
  %1208 = vmatprep.subr.bf16.mxu0 0
  %1209 = vmatpush1.bf16.msra.mxu0 0
  %1210 = vmatprep.subr.bf16.mxu0 0
  %1211 = vmatpush1.bf16.msra.mxu0 0
  %1212 = vmatprep.subr.bf16.mxu0 0
  %1213 = vmatpush1.bf16.msra.mxu0 0
  %1214 = vmatprep.subr.bf16.mxu0 0
  %1215 = vmatpush1.bf16.msra.mxu0 0
  %1216 = vmatprep.subr.bf16.mxu0 0
  %1217 = vmatpush1.bf16.msra.mxu0 0
  %1218 = vmatprep.subr.bf16.mxu0 0
  %1219 = vmatpush1.bf16.msra.mxu0 0
  %1220 = vmatprep.subr.bf16.mxu0 0
  %1221 = vmatpush1.bf16.msra.mxu0 0
  %1222 = vmatprep.subr.bf16.mxu0 0
  %1223 = vmatpush1.bf16.msra.mxu0 0
  %1224 = vmatprep.subr.bf16.mxu0 0
  %1225 = vmatpush1.bf16.msra.mxu0 0
  %1226 = vmatprep.subr.bf16.mxu0 0
  %1227 = vmatpush1.bf16.msra.mxu0 0
  %1228 = vmatprep.mubr.bf16.mxu0 0
  %1229 = vmatmul.mubr.bf16.gmra.mrb[0].mxu0 %v1194
  %v1230 = vpop.f32.mrb[0].mxu0
  %v1231 = vadd.f32 0.0, %v1230
  %v1232 = vpop.f32.mrb[0].mxu0
  %v1233 = vpop.f32.mrb[0].mxu0
  %v1234 = vpop.f32.mrb[0].mxu0
  %1235 = vdwg.mxu0
  %v1236 = vadd.f32 %v1188, %v1231
  %v1237 = vxor.u32 %v1236, 2147483648
  %v1238 = vmul.f32 %v1237, 1.442695
  %v1239 = vpow.pop %v1238
  %v1240 = vadd.f32 %v1239, 1.0
  %v1241 = vrcp.pop %v1240
  %v1242 = vmul.f32 1.0, %v1241
  %v1243 = vtanh.pop %v1236
  %v1244 = vmul.f32 %v1242, %v1181
  %1246 = vrot.lane.b32.xlu0 %v1243, 32
  %v1247 = vpop.permute.xlu0 %1246
  %v1249 = vmul.f32 %v1242, %v1247
  %1251 = vrot.lane.b32.xlu0 %v1249, 32
  %v1252 = vpop.permute.xlu0 %1251
  %v1254 = vadd.f32 %v1244, %v1252
  %v1255 = vtanh.pop %v1254
  %1257 = vrot.lane.b32.xlu0 %v1255, 32
  %v1258 = vpop.permute.xlu0 %1257
  %v1260 = vmul.f32 %v1242, %v1258
  %v1261 = vld [vmem:[%s500] sm:$0xff]
  %v1262 = vpack.c.bf16 %v1260, %v1260
  %1264 = vrot.lane.b32.xlu0 %v1262, 64
  %v1265 = vpop.permute.xlu0 %1264
  %v1267 = vsel %vm179, %v1265, 0
  %1269 = vmatprep.subr.bf16.mxu0 0
  %1270 = vmatpush1.bf16.msra.mxu0 %v973
  %1271 = vmatprep.subr.bf16.mxu0 0
  %1272 = vmatpush1.bf16.msra.mxu0 %v974
  %1273 = vmatprep.subr.bf16.mxu0 0
  %1274 = vmatpush1.bf16.msra.mxu0 0
  %1275 = vmatprep.subr.bf16.mxu0 0
  %1276 = vmatpush1.bf16.msra.mxu0 0
  %1277 = vmatprep.subr.bf16.mxu0 0
  %1278 = vmatpush1.bf16.msra.mxu0 0
  %1279 = vmatprep.subr.bf16.mxu0 0
  %1280 = vmatpush1.bf16.msra.mxu0 0
  %1281 = vmatprep.subr.bf16.mxu0 0
  %1282 = vmatpush1.bf16.msra.mxu0 0
  %1283 = vmatprep.subr.bf16.mxu0 0
  %1284 = vmatpush1.bf16.msra.mxu0 0
  %1285 = vmatprep.subr.bf16.mxu0 0
  %1286 = vmatpush1.bf16.msra.mxu0 0
  %1287 = vmatprep.subr.bf16.mxu0 0
  %1288 = vmatpush1.bf16.msra.mxu0 0
  %1289 = vmatprep.subr.bf16.mxu0 0
  %1290 = vmatpush1.bf16.msra.mxu0 0
  %1291 = vmatprep.subr.bf16.mxu0 0
  %1292 = vmatpush1.bf16.msra.mxu0 0
  %1293 = vmatprep.subr.bf16.mxu0 0
  %1294 = vmatpush1.bf16.msra.mxu0 0
  %1295 = vmatprep.subr.bf16.mxu0 0
  %1296 = vmatpush1.bf16.msra.mxu0 0
  %1297 = vmatprep.subr.bf16.mxu0 0
  %1298 = vmatpush1.bf16.msra.mxu0 0
  %1299 = vmatprep.subr.bf16.mxu0 0
  %1300 = vmatpush1.bf16.msra.mxu0 0
  %1301 = vmatprep.mubr.bf16.mxu0 0
  %1302 = vmatmul.mubr.bf16.gmra.mrb[0].mxu0 %v1267
  %v1303 = vpop.f32.mrb[0].mxu0
  %v1304 = vadd.f32 0.0, %v1303
  %v1305 = vpop.f32.mrb[0].mxu0
  %v1306 = vpop.f32.mrb[0].mxu0
  %v1307 = vpop.f32.mrb[0].mxu0
  %1308 = vdwg.mxu0
  %v1309 = vadd.f32 %v1261, %v1304
  %v1310 = vxor.u32 %v1309, 2147483648
  %v1311 = vmul.f32 %v1310, 1.442695
  %v1312 = vpow.pop %v1311
  %v1313 = vadd.f32 %v1312, 1.0
  %v1314 = vrcp.pop %v1313
  %v1315 = vmul.f32 1.0, %v1314
  %v1316 = vtanh.pop %v1309
  %v1317 = vmul.f32 %v1315, %v1254
  %1319 = vrot.lane.b32.xlu0 %v1316, 32
  %v1320 = vpop.permute.xlu0 %1319
  %v1322 = vmul.f32 %v1315, %v1320
  %1324 = vrot.lane.b32.xlu0 %v1322, 32
  %v1325 = vpop.permute.xlu0 %1324
  %v1327 = vadd.f32 %v1317, %v1325
  %v1328 = vtanh.pop %v1327
  %1330 = vrot.lane.b32.xlu0 %v1328, 32
  %v1331 = vpop.permute.xlu0 %1330
  %v1333 = vmul.f32 %v1315, %v1331
  %v1334 = vld [vmem:[%s581] sm:$0xff]
  %v1335 = vpack.c.bf16 %v1333, %v1333
  %1337 = vrot.lane.b32.xlu0 %v1335, 64
  %v1338 = vpop.permute.xlu0 %1337
  %v1340 = vsel %vm179, %v1338, 0
  %1342 = vmatprep.subr.bf16.mxu0 0
  %1343 = vmatpush1.bf16.msra.mxu0 %v973
  %1344 = vmatprep.subr.bf16.mxu0 0
  %1345 = vmatpush1.bf16.msra.mxu0 %v974
  %1346 = vmatprep.subr.bf16.mxu0 0
  %1347 = vmatpush1.bf16.msra.mxu0 0
  %1348 = vmatprep.subr.bf16.mxu0 0
  %1349 = vmatpush1.bf16.msra.mxu0 0
  %1350 = vmatprep.subr.bf16.mxu0 0
  %1351 = vmatpush1.bf16.msra.mxu0 0
  %1352 = vmatprep.subr.bf16.mxu0 0
  %1353 = vmatpush1.bf16.msra.mxu0 0
  %1354 = vmatprep.subr.bf16.mxu0 0
  %1355 = vmatpush1.bf16.msra.mxu0 0
  %1356 = vmatprep.subr.bf16.mxu0 0
  %1357 = vmatpush1.bf16.msra.mxu0 0
  %1358 = vmatprep.subr.bf16.mxu0 0
  %1359 = vmatpush1.bf16.msra.mxu0 0
  %1360 = vmatprep.subr.bf16.mxu0 0
  %1361 = vmatpush1.bf16.msra.mxu0 0
  %1362 = vmatprep.subr.bf16.mxu0 0
  %1363 = vmatpush1.bf16.msra.mxu0 0
  %1364 = vmatprep.subr.bf16.mxu0 0
  %1365 = vmatpush1.bf16.msra.mxu0 0
  %1366 = vmatprep.subr.bf16.mxu0 0
  %1367 = vmatpush1.bf16.msra.mxu0 0
  %1368 = vmatprep.subr.bf16.mxu0 0
  %1369 = vmatpush1.bf16.msra.mxu0 0
  %1370 = vmatprep.subr.bf16.mxu0 0
  %1371 = vmatpush1.bf16.msra.mxu0 0
  %1372 = vmatprep.subr.bf16.mxu0 0
  %1373 = vmatpush1.bf16.msra.mxu0 0
  %1374 = vmatprep.mubr.bf16.mxu0 0
  %1375 = vmatmul.mubr.bf16.gmra.mrb[0].mxu0 %v1340
  %v1376 = vpop.f32.mrb[0].mxu0
  %v1377 = vadd.f32 0.0, %v1376
  %v1378 = vpop.f32.mrb[0].mxu0
  %v1379 = vpop.f32.mrb[0].mxu0
  %v1380 = vpop.f32.mrb[0].mxu0
  %1381 = vdwg.mxu0
  %v1382 = vadd.f32 %v1334, %v1377
  %v1383 = vxor.u32 %v1382, 2147483648
  %v1384 = vmul.f32 %v1383, 1.442695
  %v1385 = vpow.pop %v1384
  %v1386 = vadd.f32 %v1385, 1.0
  %v1387 = vrcp.pop %v1386
  %v1388 = vmul.f32 1.0, %v1387
  %v1389 = vtanh.pop %v1382
  %v1390 = vmul.f32 %v1388, %v1327
  %1392 = vrot.lane.b32.xlu0 %v1389, 32
  %v1393 = vpop.permute.xlu0 %1392
  %v1395 = vmul.f32 %v1388, %v1393
  %1397 = vrot.lane.b32.xlu0 %v1395, 32
  %v1398 = vpop.permute.xlu0 %1397
  %v1400 = vadd.f32 %v1390, %v1398
  %v1401 = vtanh.pop %v1400
  %1403 = vrot.lane.b32.xlu0 %v1401, 32
  %v1404 = vpop.permute.xlu0 %1403
  %v1406 = vmul.f32 %v1388, %v1404
  %v1407 = vld [vmem:[%s662] sm:$0xff]
  %v1408 = vpack.c.bf16 %v1406, %v1406
  %1410 = vrot.lane.b32.xlu0 %v1408, 64
  %v1411 = vpop.permute.xlu0 %1410
  %v1413 = vsel %vm179, %v1411, 0
  %1415 = vmatprep.subr.bf16.mxu0 0
  %1416 = vmatpush1.bf16.msra.mxu0 %v973
  %1417 = vmatprep.subr.bf16.mxu0 0
  %1418 = vmatpush1.bf16.msra.mxu0 %v974
  %1419 = vmatprep.subr.bf16.mxu0 0
  %1420 = vmatpush1.bf16.msra.mxu0 0
  %1421 = vmatprep.subr.bf16.mxu0 0
  %1422 = vmatpush1.bf16.msra.mxu0 0
  %1423 = vmatprep.subr.bf16.mxu0 0
  %1424 = vmatpush1.bf16.msra.mxu0 0
  %1425 = vmatprep.subr.bf16.mxu0 0
  %1426 = vmatpush1.bf16.msra.mxu0 0
  %1427 = vmatprep.subr.bf16.mxu0 0
  %1428 = vmatpush1.bf16.msra.mxu0 0
  %1429 = vmatprep.subr.bf16.mxu0 0
  %1430 = vmatpush1.bf16.msra.mxu0 0
  %1431 = vmatprep.subr.bf16.mxu0 0
  %1432 = vmatpush1.bf16.msra.mxu0 0
  %1433 = vmatprep.subr.bf16.mxu0 0
  %1434 = vmatpush1.bf16.msra.mxu0 0
  %1435 = vmatprep.subr.bf16.mxu0 0
  %1436 = vmatpush1.bf16.msra.mxu0 0
  %1437 = vmatprep.subr.bf16.mxu0 0
  %1438 = vmatpush1.bf16.msra.mxu0 0
  %1439 = vmatprep.subr.bf16.mxu0 0
  %1440 = vmatpush1.bf16.msra.mxu0 0
  %1441 = vmatprep.subr.bf16.mxu0 0
  %1442 = vmatpush1.bf16.msra.mxu0 0
  %1443 = vmatprep.subr.bf16.mxu0 0
  %1444 = vmatpush1.bf16.msra.mxu0 0
  %1445 = vmatprep.subr.bf16.mxu0 0
  %1446 = vmatpush1.bf16.msra.mxu0 0
  %1447 = vmatprep.mubr.bf16.mxu0 0
  %1448 = vmatmul.mubr.bf16.gmra.mrb[0].mxu0 %v1413
  %v1449 = vpop.f32.mrb[0].mxu0
  %v1450 = vadd.f32 0.0, %v1449
  %v1451 = vpop.f32.mrb[0].mxu0
  %v1452 = vpop.f32.mrb[0].mxu0
  %v1453 = vpop.f32.mrb[0].mxu0
  %1454 = vdwg.mxu0
  %v1455 = vadd.f32 %v1407, %v1450
  %v1456 = vxor.u32 %v1455, 2147483648
  %v1457 = vmul.f32 %v1456, 1.442695
  %v1458 = vpow.pop %v1457
  %v1459 = vadd.f32 %v1458, 1.0
  %v1460 = vrcp.pop %v1459
  %v1461 = vmul.f32 1.0, %v1460
  %v1462 = vtanh.pop %v1455
  %v1463 = vmul.f32 %v1461, %v1400
  %1465 = vrot.lane.b32.xlu0 %v1462, 32
  %v1466 = vpop.permute.xlu0 %1465
  %v1468 = vmul.f32 %v1461, %v1466
  %1470 = vrot.lane.b32.xlu0 %v1468, 32
  %v1471 = vpop.permute.xlu0 %1470
  %v1473 = vadd.f32 %v1463, %v1471
  %v1474 = vtanh.pop %v1473
  %1476 = vrot.lane.b32.xlu0 %v1474, 32
  %v1477 = vpop.permute.xlu0 %1476
  %v1479 = vmul.f32 %v1461, %v1477
  %v1480 = vld [vmem:[%s743] sm:$0xff]
  %v1481 = vpack.c.bf16 %v1479, %v1479
  %1483 = vrot.lane.b32.xlu0 %v1481, 64
  %v1484 = vpop.permute.xlu0 %1483
  %v1486 = vsel %vm179, %v1484, 0
  %1488 = vmatprep.subr.bf16.mxu0 0
  %1489 = vmatpush1.bf16.msra.mxu0 %v973
  %1490 = vmatprep.subr.bf16.mxu0 0
  %1491 = vmatpush1.bf16.msra.mxu0 %v974
  %1492 = vmatprep.subr.bf16.mxu0 0
  %1493 = vmatpush1.bf16.msra.mxu0 0
  %1494 = vmatprep.subr.bf16.mxu0 0
  %1495 = vmatpush1.bf16.msra.mxu0 0
  %1496 = vmatprep.subr.bf16.mxu0 0
  %1497 = vmatpush1.bf16.msra.mxu0 0
  %1498 = vmatprep.subr.bf16.mxu0 0
  %1499 = vmatpush1.bf16.msra.mxu0 0
  %1500 = vmatprep.subr.bf16.mxu0 0
  %1501 = vmatpush1.bf16.msra.mxu0 0
  %1502 = vmatprep.subr.bf16.mxu0 0
  %1503 = vmatpush1.bf16.msra.mxu0 0
  %1504 = vmatprep.subr.bf16.mxu0 0
  %1505 = vmatpush1.bf16.msra.mxu0 0
  %1506 = vmatprep.subr.bf16.mxu0 0
  %1507 = vmatpush1.bf16.msra.mxu0 0
  %1508 = vmatprep.subr.bf16.mxu0 0
  %1509 = vmatpush1.bf16.msra.mxu0 0
  %1510 = vmatprep.subr.bf16.mxu0 0
  %1511 = vmatpush1.bf16.msra.mxu0 0
  %1512 = vmatprep.subr.bf16.mxu0 0
  %1513 = vmatpush1.bf16.msra.mxu0 0
  %1514 = vmatprep.subr.bf16.mxu0 0
  %1515 = vmatpush1.bf16.msra.mxu0 0
  %1516 = vmatprep.subr.bf16.mxu0 0
  %1517 = vmatpush1.bf16.msra.mxu0 0
  %1518 = vmatprep.subr.bf16.mxu0 0
  %1519 = vmatpush1.bf16.msra.mxu0 0
  %1520 = vmatprep.mubr.bf16.mxu0 0
  %1521 = vmatmul.mubr.bf16.gmra.mrb[0].mxu0 %v1486
  %v1522 = vpop.f32.mrb[0].mxu0
  %v1523 = vadd.f32 0.0, %v1522
  %v1524 = vpop.f32.mrb[0].mxu0
  %v1525 = vpop.f32.mrb[0].mxu0
  %v1526 = vpop.f32.mrb[0].mxu0
  %1527 = vdwg.mxu0
  %v1528 = vadd.f32 %v1480, %v1523
  %v1529 = vxor.u32 %v1528, 2147483648
  %v1530 = vmul.f32 %v1529, 1.442695
  %v1531 = vpow.pop %v1530
  %v1532 = vadd.f32 %v1531, 1.0
  %v1533 = vrcp.pop %v1532
  %v1534 = vmul.f32 1.0, %v1533
  %v1535 = vtanh.pop %v1528
  %v1536 = vmul.f32 %v1534, %v1473
  %1538 = vrot.lane.b32.xlu0 %v1535, 32
  %v1539 = vpop.permute.xlu0 %1538
  %v1541 = vmul.f32 %v1534, %v1539
  %1543 = vrot.lane.b32.xlu0 %v1541, 32
  %v1544 = vpop.permute.xlu0 %1543
  %v1546 = vadd.f32 %v1536, %v1544
  %v1547 = vtanh.pop %v1546
  %1549 = vrot.lane.b32.xlu0 %v1547, 32
  %v1550 = vpop.permute.xlu0 %1549
  %v1552 = vmul.f32 %v1534, %v1550
  %v1553 = vpack.c.bf16 %v1552, %v1552
  %v1554 = vld [vmem:[%s7] sm:$0xf]
  %v1555 = vld [vmem:[%s7 + $0x4] sm:$0xf]
  %v1556 = vld [vmem:[%s7 + $0x8] sm:$0xf]
  %v1557 = vld [vmem:[%s7 + $0xc] sm:$0xf]
  %v1558 = vld [vmem:[%s8] sm:$0x1]
  %v1560 = vlaneseq
  %v1561 = vshrl.u32 %v1560, 7
  %v1562 = vsub.s32 0, %v1561
  %v1563 = vrot.slane %v1558, %v1562
  %1566 = vrot.lane.b32.xlu0 %v1553, 64
  %v1567 = vpop.permute.xlu0 %1566
  %v1572 = vunpack.c.l.b16 %v1554
  %v1573 = vunpack.c.l.b16 %v1555
  %v1574 = vunpack.c.l.b16 %v1556
  %v1575 = vunpack.c.l.b16 %v1557
  %v1576 = vpack.c.b16 %v1573, %v1572
  %v1577 = vpack.c.b16 %v1575, %v1574
  %v1581 = vsel %vm179, %v1567, 0
  %1583 = vmatprep.subr.bf16.mxu0 0
  %1584 = vmatpush1.bf16.msra.mxu0 %v1576
  %1585 = vmatprep.subr.bf16.mxu0 0
  %1586 = vmatpush1.bf16.msra.mxu0 %v1577
  %1587 = vmatprep.subr.bf16.mxu0 0
  %1588 = vmatpush1.bf16.msra.mxu0 0
  %1589 = vmatprep.subr.bf16.mxu0 0
  %1590 = vmatpush1.bf16.msra.mxu0 0
  %1591 = vmatprep.subr.bf16.mxu0 0
  %1592 = vmatpush1.bf16.msra.mxu0 0
  %1593 = vmatprep.subr.bf16.mxu0 0
  %1594 = vmatpush1.bf16.msra.mxu0 0
  %1595 = vmatprep.subr.bf16.mxu0 0
  %1596 = vmatpush1.bf16.msra.mxu0 0
  %1597 = vmatprep.subr.bf16.mxu0 0
  %1598 = vmatpush1.bf16.msra.mxu0 0
  %1599 = vmatprep.subr.bf16.mxu0 0
  %1600 = vmatpush1.bf16.msra.mxu0 0
  %1601 = vmatprep.subr.bf16.mxu0 0
  %1602 = vmatpush1.bf16.msra.mxu0 0
  %1603 = vmatprep.subr.bf16.mxu0 0
  %1604 = vmatpush1.bf16.msra.mxu0 0
  %1605 = vmatprep.subr.bf16.mxu0 0
  %1606 = vmatpush1.bf16.msra.mxu0 0
  %1607 = vmatprep.subr.bf16.mxu0 0
  %1608 = vmatpush1.bf16.msra.mxu0 0
  %1609 = vmatprep.subr.bf16.mxu0 0
  %1610 = vmatpush1.bf16.msra.mxu0 0
  %1611 = vmatprep.subr.bf16.mxu0 0
  %1612 = vmatpush1.bf16.msra.mxu0 0
  %1613 = vmatprep.subr.bf16.mxu0 0
  %1614 = vmatpush1.bf16.msra.mxu0 0
  %1615 = vmatprep.mubr.bf16.mxu0 0
  %1616 = vmatmul.mubr.bf16.gmra.mrb[0].mxu0 %v1581
  %v1617 = vpop.f32.mrb[0].mxu0
  %v1618 = vadd.f32 %v1563, %v1617
  %v1619 = vpop.f32.mrb[0].mxu0
  %v1620 = vpop.f32.mrb[0].mxu0
  %v1621 = vpop.f32.mrb[0].mxu0
  %1622 = vdwg.mxu0
  %vm1623 = vcmask 80896
  %1624 = vst.msk [vmem:[%s9] sm:$0xff] %vm1623, %v1618
  // Predicated region
  $region38: #{robustlog_forward.1} parent=0 // pred_check
    _
  $region39: #{robustlog_forward.1} parent=0 // pred_check_branch
    %1626 = sbr.rel (0) target = $region41
  $region40: #{robustlog_forward.1} parent=0 // pred_region
    _
  $region41: #{robustlog_forward.1} parent=0 // pred_fallthru
    _
  // Predicated region
  $region42: #{robustlog_forward.1} parent=0 // pred_check
    _
  $region43: #{robustlog_forward.1} parent=0 // pred_check_branch
    %1628 = sbr.rel (0) target = $region45
  $region44: #{robustlog_forward.1} parent=0 // pred_region
    _
  $region45: #{robustlog_forward.1} parent=0 // pred_fallthru
    _

</llo_original>
